<compile_context>
chip_gen: v6e
topology: v6e:2x2x1
jax: 0.10.0
libtpu: 0.0.40
codegen_flags: <defaults>
</compile_context>

<pallas_src>
import jax
import jax.numpy as jnp
import numpy as np
from jax.experimental import pallas as pl
from jax.experimental.pallas import tpu as pltpu


def _round_up(x, m):
    return ((x + m - 1) // m) * m


def _as_f32(x):
    x = jnp.asarray(x)
    return x if x.dtype == jnp.float32 else x.astype(jnp.float32)


# ----------------------------------------------------------------------------
# Parameter packing (done ONCE at init): one VMEM slab + one SMEM vector.
#   slab rows (width L = round_up(max(T*H, Dt, Di, T+1), 128)):
#     0..T-1        : expand E[i, i*H+k] = 1                     ([T, TH])
#     T             : nam_w1 flat (lane i*H+k)
#     T+1           : nam_b1 flat
#     T+2           : nam_w2 flat
#     T+3           : nam_b2 (lanes 0..T-1)
#     T+4           : text_w (lanes 0..Dt-1)
#     T+5           : img_w  (lanes 0..Di-1)
#     T+6..T+5+TH   : reduceT = [E^T | 1]                        ([TH, T+1])
#   scalars f32[17]: [text_b, img_b, fusion_w row-major (9), fusion_b (3),
#                     out_w, out_b, sum(nam_b2)]
# ----------------------------------------------------------------------------
def pack_params(p):
    f32 = jnp.float32
    T, H = p["nam_w1"].shape
    Dt = p["text_w"].shape[1]
    Di = p["img_w"].shape[1]
    TH = T * H
    L = _round_up(max(TH, Dt, Di, T + 1), 128)

    def row(x):
        x = jnp.asarray(x, f32).reshape(1, -1)
        return jnp.pad(x, ((0, 0), (0, L - x.shape[1])))

    expand = jnp.kron(jnp.eye(T, dtype=f32), jnp.ones((1, H), f32))   # [T, TH]
    reduce_t = jnp.concatenate(
        [expand.T, jnp.ones((TH, 1), f32)], axis=1)                   # [TH, T+1]

    slab = jnp.concatenate([
        jnp.pad(expand, ((0, 0), (0, L - TH))),
        row(p["nam_w1"]), row(p["nam_b1"]), row(p["nam_w2"]), row(p["nam_b2"]),
        row(p["text_w"]), row(p["img_w"]),
        jnp.pad(reduce_t, ((0, 0), (0, L - (T + 1)))),
    ], axis=0)                                                        # [T+6+TH, L]

    scalars = jnp.concatenate([
        jnp.reshape(p["text_b"], (-1,)), jnp.reshape(p["img_b"], (-1,)),
        jnp.reshape(p["fusion_w"], (-1,)), jnp.reshape(p["fusion_b"], (-1,)),
        jnp.reshape(p["out_w"], (-1,)), jnp.reshape(p["out_b"], (-1,)),
        jnp.reshape(jnp.sum(jnp.asarray(p["nam_b2"], f32)), (-1,)),
    ]).astype(f32)                                                    # (17,)

    meta = dict(T=T, H=H, Dt=Dt, Di=Di, L=L)
    return slab, scalars, meta


def _make_kernel(T, H, Dt, Di):
    TH = T * H
    RT0 = T + 6          # first slab row of the pre-transposed reduce matrix

    def kernel(tab_ref, txt_ref, img_ref, slab_ref, sc_ref, out_ref):
        f32 = jnp.float32
        hi = jax.lax.Precision.HIGHEST

        tab = tab_ref[...]                                    # [Bb, T]

        # ---- NAM on a full TH-lane axis ----------------------------------
        expand = slab_ref[0:T, 0:TH]                          # [T, TH] one-hot
        tab_b = jax.lax.dot_general(tab, expand, (((1,), (0,)), ((), ())),
                                    preferred_element_type=f32, precision=hi)
        w1 = slab_ref[T + 0:T + 1, 0:TH]
        b1 = slab_ref[T + 1:T + 2, 0:TH]
        w2 = slab_ref[T + 2:T + 3, 0:TH]
        prod = jnp.maximum(tab_b * w1 + b1, 0.0) * w2         # pure VPU [Bb,TH]

        # per-feature reduction + batch-sum folded into ONE MXU matmul:
        # reduce_t = [E^T | ones]  ->  red[:, :T] = per-feature sums,
        #                              red[:,  T] = sum over all features.
        reduce_t = slab_ref[RT0:RT0 + TH, 0:T + 1]            # [TH, T+1]
        red = jax.lax.dot_general(prod, reduce_t, (((1,), (0,)), ((), ())),
                                  preferred_element_type=f32, precision=hi)
        contribs = red[:, 0:T] + slab_ref[T + 3:T + 4, 0:T]   # + nam_b2
        tab_score = red[:, T:T + 1] + sc_ref[16]              # + sum(nam_b2)

        # ---- text / image projections (Linear(D,1): VPU mul + lane reduce)
        text_score = (jnp.sum(txt_ref[...] * slab_ref[T + 4:T + 5, 0:Dt],
                              axis=1, keepdims=True) + sc_ref[0])
        img_score = (jnp.sum(img_ref[...] * slab_ref[T + 5:T + 6, 0:Di],
                             axis=1, keepdims=True) + sc_ref[1])

        # ---- fusion Linear(3,3) + softmax, column-wise (no concat) -------
        def logit(j):
            return (tab_score * sc_ref[2 + 3 * j]
                    + text_score * sc_ref[3 + 3 * j]
                    + img_score * sc_ref[4 + 3 * j]
                    + sc_ref[11 + j])

        l0, l1, l2 = logit(0), logit(1), logit(2)
        m = jnp.maximum(jnp.maximum(l0, l1), l2)
        e0, e1, e2 = jnp.exp(l0 - m), jnp.exp(l1 - m), jnp.exp(l2 - m)
        inv = 1.0 / (e0 + e1 + e2)        # exact: softmax must match the ref
        wt0, wt1, wt2 = e0 * inv, e1 * inv, e2 * inv

        fused = tab_score * wt0 + text_score * wt1 + img_score * wt2
        out = fused * sc_ref[14] + sc_ref[15]                 # out Linear(1,1)

        # ---- direct sub-slice stores into the trimmed (1+T+3)-lane output
        out_ref[:, 0:1] = out
        out_ref[:, 1:1 + T] = contribs
        out_ref[:, 1 + T:2 + T] = wt0
        out_ref[:, 2 + T:3 + T] = wt1
        out_ref[:, 3 + T:4 + T] = wt2

    return kernel


def nafr_head(tab, txt, img, attn_weights, packed, *, max_block_b=4096):
    slab, scalars, meta = packed
    T, H, Dt, Di = meta["T"], meta["H"], meta["Dt"], meta["Di"]
    TH = T * H
    B = tab.shape[0]
    OUT_W = 1 + T + 3

    tab = _as_f32(tab)
    txt = _as_f32(txt)
    img = _as_f32(img)

    # ---- batch-block planning -------------------------------------------
    # VMEM budget per block: double-buffered I/O rows + ~4 [bb, TH] f32 temps
    # (tab_b / prod / intermediates).  Keep under ~40 MiB so it fits v7x's
    # 64 MiB physical VMEM with headroom; vmem_limit_bytes raised to 48 MiB.
    bytes_per_row = 4 * (2 * (T + Dt + Di + OUT_W) + 4 * TH)
    budget = 40 * 1024 * 1024
    max_block_b = max(8, min(max_block_b, (budget // bytes_per_row) // 8 * 8))

    if B <= max_block_b:
        # Single exact block (block dims == full array dims): always legal,
        # no host-side padding, no masked edges.
        bb, n_blocks = B, 1
    else:
        # >= 2 blocks so both v7x TensorCores get work on the parallel axis.
        nblk = max(2, pl.cdiv(B, max_block_b))
        bb = _round_up(pl.cdiv(B, nblk), 8)
        n_blocks = pl.cdiv(B, bb)   # ragged tail handled by Pallas edge masking

    kernel = _make_kernel(T, H, Dt, Di)
    packed_out = pl.pallas_call(
        kernel,
        out_shape=jax.ShapeDtypeStruct((B, OUT_W), jnp.float32),
        grid=(n_blocks,),
        in_specs=[
            pl.BlockSpec((bb, T), lambda i: (i, 0)),
            pl.BlockSpec((bb, Dt), lambda i: (i, 0)),
            pl.BlockSpec((bb, Di), lambda i: (i, 0)),
            pl.BlockSpec(slab.shape, lambda i: (0, 0)),            # param slab
            pl.BlockSpec(memory_space=pltpu.MemorySpace.SMEM),     # 17 scalars
        ],
        out_specs=pl.BlockSpec((bb, OUT_W), lambda i: (i, 0)),
        compiler_params=pltpu.CompilerParams(
            dimension_semantics=("parallel",),
            vmem_limit_bytes=48 * 1024 * 1024),
    )(tab, txt, img, slab, scalars)

    out = packed_out[:, 0:1]
    contribs = packed_out[:, 1:1 + T]
    weights = packed_out[:, 1 + T:1 + T + 3]
    # attn_weights is passed straight through by the PyTorch module.
    return out, contribs, attn_weights, weights


def init_params(key, tab_dim, text_dim, img_dim, hidden=32):
    ks = jax.random.split(key, 12)
    f32 = jnp.float32
    return {
        # NAM: feature net i has Linear(1,H) weight (row i of nam_w1) and
        # Linear(H,1) weight (row i of nam_w2).
        "nam_w1": jax.random.normal(ks[0], (tab_dim, hidden), f32) * 0.5,
        "nam_b1": jax.random.normal(ks[1], (tab_dim, hidden), f32) * 0.1,
        "nam_w2": jax.random.normal(ks[2], (tab_dim, hidden), f32) * 0.5,
        "nam_b2": jax.random.normal(ks[3], (1, tab_dim), f32) * 0.1,
        "text_w": jax.random.normal(ks[4], (1, text_dim), f32) * 0.2,
        "text_b": jax.random.normal(ks[5], (1, 1), f32) * 0.1,
        "img_w": jax.random.normal(ks[6], (1, img_dim), f32) * 0.2,
        "img_b": jax.random.normal(ks[7], (1, 1), f32) * 0.1,
        "fusion_w": jax.random.normal(ks[8], (3, 3), f32) * 0.5,
        "fusion_b": jax.random.normal(ks[9], (1, 3), f32) * 0.1,
        "out_w": jax.random.normal(ks[10], (1, 1), f32) * 0.5,
        "out_b": jax.random.normal(ks[11], (1, 1), f32) * 0.1,
    }


def nafr_head_ref(tab, txt, img, attn_weights, p):
    """Pure-JAX reference (mirrors the PyTorch forward exactly)."""
    h = jnp.maximum(tab[:, :, None] * p["nam_w1"] + p["nam_b1"], 0.0)
    contribs = jnp.sum(h * p["nam_w2"], axis=2) + p["nam_b2"]
    tab_score = jnp.sum(contribs, axis=1, keepdims=True)
    text_score = txt @ p["text_w"].T + p["text_b"]
    img_score = img @ p["img_w"].T + p["img_b"]
    scores = jnp.concatenate([tab_score, text_score, img_score], axis=1)
    weights = jax.nn.softmax(scores @ p["fusion_w"].T + p["fusion_b"], axis=1)
    fused = jnp.sum(scores * weights, axis=1, keepdims=True)
    return fused @ p["out_w"].T + p["out_b"], contribs, attn_weights, weights


if __name__ == "__main__":
    B, TAB, TXT, IMG = 4, 4, 16, 16
    key = jax.random.PRNGKey(0)
    k1, k2, k3, k4, kp = jax.random.split(key, 5)
    tab = jax.random.normal(k1, (B, TAB), jnp.float32)
    txt = jax.random.normal(k2, (B, TXT), jnp.float32)
    img = jax.random.normal(k3, (B, IMG), jnp.float32)
    attn_weights = jax.random.normal(k4, (B, 8), jnp.float32)  # passed through

    params = init_params(kp, TAB, TXT, IMG, hidden=32)
    packed = pack_params(params)   # packed ONCE at init (hoisted out of calls)

    out, contribs, aw, weights = nafr_head(tab, txt, img, attn_weights, packed)
    jax.block_until_ready((out, contribs, aw, weights))

    r_out, r_contribs, r_aw, r_weights = nafr_head_ref(tab, txt, img,
                                                       attn_weights, params)
    assert np.allclose(np.asarray(contribs), np.asarray(r_contribs), atol=1e-4)
    assert np.allclose(np.asarray(weights), np.asarray(r_weights), atol=1e-4)
    assert np.allclose(np.asarray(out), np.asarray(r_out), atol=1e-4)
    assert np.allclose(np.asarray(aw), np.asarray(r_aw))

    print("KERNEL_OK")
</pallas_src>

<mosaic_0001>
module attributes {stable_mosaic.version = 11 : i64} {
  func.func @kernel(%arg0: i32, %arg1: memref<4x4xf32, #tpu.memory_space<vmem>>, %arg2: memref<4x16xf32, #tpu.memory_space<vmem>>, %arg3: memref<4x16xf32, #tpu.memory_space<vmem>>, %arg4: memref<138x128xf32, #tpu.memory_space<vmem>>, %arg5: memref<17xf32, #tpu.memory_space<smem>>, %arg6: memref<4x8xf32, #tpu.memory_space<vmem>>) attributes {dimension_semantics = [#tpu.dimension_semantics<parallel>], iteration_bounds = array<i64: 1>, scalar_prefetch = 0 : i64, scratch_operands = 0 : i64, tpu.core_type = #tpu.core_type<tc>, window_params = [{transform_indices = @transform_0, window_bounds = array<i64: 4, 4>}, {transform_indices = @transform_1, window_bounds = array<i64: 4, 16>}, {transform_indices = @transform_2, window_bounds = array<i64: 4, 16>}, {pipeline_mode = #tpu.pipeline_mode<synchronous>, transform_indices = @transform_3, window_bounds = array<i64: 138, 128>}, {transform_indices = @transform_4, window_bounds = array<i64: 17>}, {transform_indices = @transform_5, window_bounds = array<i64: 4, 8>}]} {
    %c0 = arith.constant 0 : index
    %c0_0 = arith.constant 0 : index
    %0 = vector.load %arg1[%c0, %c0_0] : memref<4x4xf32, #tpu.memory_space<vmem>>, vector<4x4xf32>
    %c0_1 = arith.constant 0 : index
    %c0_2 = arith.constant 0 : index
    %1 = vector.load %arg4[%c0_1, %c0_2] : memref<138x128xf32, #tpu.memory_space<vmem>>, vector<4x128xf32>
    %cst = arith.constant dense<0.000000e+00> : vector<4x128xf32>
    %2 = tpu.matmul %0, %1, %cst {dimension_numbers = #tpu.dot_dimension_numbers<[1], [0], [0], [1], [0, 0, 1, 1], [], []>, precision = #tpu.contract_precision<fp32>} : vector<4x4xf32>, vector<4x128xf32>, vector<4x128xf32> -> vector<4x128xf32>
    %c4 = arith.constant 4 : index
    %c0_3 = arith.constant 0 : index
    %3 = vector.load %arg4[%c4, %c0_3] : memref<138x128xf32, #tpu.memory_space<vmem>>, vector<1x128xf32>
    %c5 = arith.constant 5 : index
    %c0_4 = arith.constant 0 : index
    %4 = vector.load %arg4[%c5, %c0_4] : memref<138x128xf32, #tpu.memory_space<vmem>>, vector<1x128xf32>
    %c6 = arith.constant 6 : index
    %c0_5 = arith.constant 0 : index
    %5 = vector.load %arg4[%c6, %c0_5] : memref<138x128xf32, #tpu.memory_space<vmem>>, vector<1x128xf32>
    %6 = vector.broadcast %3 : vector<1x128xf32> to vector<4x128xf32>
    %7 = arith.mulf %2, %6 : vector<4x128xf32>
    %8 = vector.broadcast %4 : vector<1x128xf32> to vector<4x128xf32>
    %9 = arith.addf %7, %8 : vector<4x128xf32>
    %cst_6 = arith.constant 0.000000e+00 : f32
    %10 = vector.broadcast %cst_6 : f32 to vector<4x128xf32>
    %11 = arith.maximumf %9, %10 : vector<4x128xf32>
    %12 = vector.broadcast %5 : vector<1x128xf32> to vector<4x128xf32>
    %13 = arith.mulf %11, %12 : vector<4x128xf32>
    %c10 = arith.constant 10 : index
    %c0_7 = arith.constant 0 : index
    %14 = vector.load %arg4[%c10, %c0_7] : memref<138x128xf32, #tpu.memory_space<vmem>>, vector<128x5xf32>
    %cst_8 = arith.constant dense<0.000000e+00> : vector<4x5xf32>
    %15 = tpu.matmul %13, %14, %cst_8 {dimension_numbers = #tpu.dot_dimension_numbers<[1], [0], [0], [1], [0, 0, 1, 1], [], []>, precision = #tpu.contract_precision<fp32>} : vector<4x128xf32>, vector<128x5xf32>, vector<4x5xf32> -> vector<4x5xf32>
    %16 = vector.extract_strided_slice %15 {offsets = [0, 0], sizes = [4, 4], strides = [1, 1]} : vector<4x5xf32> to vector<4x4xf32>
    %c7 = arith.constant 7 : index
    %c0_9 = arith.constant 0 : index
    %17 = vector.load %arg4[%c7, %c0_9] : memref<138x128xf32, #tpu.memory_space<vmem>>, vector<1x4xf32>
    %18 = vector.broadcast %17 : vector<1x4xf32> to vector<4x4xf32>
    %19 = arith.addf %16, %18 : vector<4x4xf32>
    %20 = vector.extract_strided_slice %15 {offsets = [0, 4], sizes = [4, 1], strides = [1, 1]} : vector<4x5xf32> to vector<4x1xf32>
    %c16 = arith.constant 16 : index
    %21 = memref.load %arg5[%c16] : memref<17xf32, #tpu.memory_space<smem>>
    %22 = vector.broadcast %21 : f32 to vector<4x1xf32>
    %23 = arith.addf %20, %22 : vector<4x1xf32>
    %c0_10 = arith.constant 0 : index
    %c0_11 = arith.constant 0 : index
    %24 = vector.load %arg2[%c0_10, %c0_11] : memref<4x16xf32, #tpu.memory_space<vmem>>, vector<4x16xf32>
    %c8 = arith.constant 8 : index
    %c0_12 = arith.constant 0 : index
    %25 = vector.load %arg4[%c8, %c0_12] : memref<138x128xf32, #tpu.memory_space<vmem>>, vector<1x16xf32>
    %26 = vector.broadcast %25 : vector<1x16xf32> to vector<4x16xf32>
    %27 = arith.mulf %24, %26 : vector<4x16xf32>
    %cst_13 = arith.constant dense<0.000000e+00> : vector<4xf32>
    %28 = vector.multi_reduction <add>, %27, %cst_13 [1] : vector<4x16xf32> to vector<4xf32>
    %29 = vector.shape_cast %28 : vector<4xf32> to vector<4x1xf32>
    %c0_14 = arith.constant 0 : index
    %30 = memref.load %arg5[%c0_14] : memref<17xf32, #tpu.memory_space<smem>>
    %31 = vector.broadcast %30 : f32 to vector<4x1xf32>
    %32 = arith.addf %29, %31 : vector<4x1xf32>
    %c0_15 = arith.constant 0 : index
    %c0_16 = arith.constant 0 : index
    %33 = vector.load %arg3[%c0_15, %c0_16] : memref<4x16xf32, #tpu.memory_space<vmem>>, vector<4x16xf32>
    %c9 = arith.constant 9 : index
    %c0_17 = arith.constant 0 : index
    %34 = vector.load %arg4[%c9, %c0_17] : memref<138x128xf32, #tpu.memory_space<vmem>>, vector<1x16xf32>
    %35 = vector.broadcast %34 : vector<1x16xf32> to vector<4x16xf32>
    %36 = arith.mulf %33, %35 : vector<4x16xf32>
    %cst_18 = arith.constant dense<0.000000e+00> : vector<4xf32>
    %37 = vector.multi_reduction <add>, %36, %cst_18 [1] : vector<4x16xf32> to vector<4xf32>
    %38 = vector.shape_cast %37 : vector<4xf32> to vector<4x1xf32>
    %c1 = arith.constant 1 : index
    %39 = memref.load %arg5[%c1] : memref<17xf32, #tpu.memory_space<smem>>
    %40 = vector.broadcast %39 : f32 to vector<4x1xf32>
    %41 = arith.addf %38, %40 : vector<4x1xf32>
    %c2 = arith.constant 2 : index
    %42 = memref.load %arg5[%c2] : memref<17xf32, #tpu.memory_space<smem>>
    %43 = vector.broadcast %42 : f32 to vector<4x1xf32>
    %44 = arith.mulf %23, %43 : vector<4x1xf32>
    %c3 = arith.constant 3 : index
    %45 = memref.load %arg5[%c3] : memref<17xf32, #tpu.memory_space<smem>>
    %46 = vector.broadcast %45 : f32 to vector<4x1xf32>
    %47 = arith.mulf %32, %46 : vector<4x1xf32>
    %48 = arith.addf %44, %47 : vector<4x1xf32>
    %c4_19 = arith.constant 4 : index
    %49 = memref.load %arg5[%c4_19] : memref<17xf32, #tpu.memory_space<smem>>
    %50 = vector.broadcast %49 : f32 to vector<4x1xf32>
    %51 = arith.mulf %41, %50 : vector<4x1xf32>
    %52 = arith.addf %48, %51 : vector<4x1xf32>
    %c11 = arith.constant 11 : index
    %53 = memref.load %arg5[%c11] : memref<17xf32, #tpu.memory_space<smem>>
    %54 = vector.broadcast %53 : f32 to vector<4x1xf32>
    %55 = arith.addf %52, %54 : vector<4x1xf32>
    %c5_20 = arith.constant 5 : index
    %56 = memref.load %arg5[%c5_20] : memref<17xf32, #tpu.memory_space<smem>>
    %57 = vector.broadcast %56 : f32 to vector<4x1xf32>
    %58 = arith.mulf %23, %57 : vector<4x1xf32>
    %c6_21 = arith.constant 6 : index
    %59 = memref.load %arg5[%c6_21] : memref<17xf32, #tpu.memory_space<smem>>
    %60 = vector.broadcast %59 : f32 to vector<4x1xf32>
    %61 = arith.mulf %32, %60 : vector<4x1xf32>
    %62 = arith.addf %58, %61 : vector<4x1xf32>
    %c7_22 = arith.constant 7 : index
    %63 = memref.load %arg5[%c7_22] : memref<17xf32, #tpu.memory_space<smem>>
    %64 = vector.broadcast %63 : f32 to vector<4x1xf32>
    %65 = arith.mulf %41, %64 : vector<4x1xf32>
    %66 = arith.addf %62, %65 : vector<4x1xf32>
    %c12 = arith.constant 12 : index
    %67 = memref.load %arg5[%c12] : memref<17xf32, #tpu.memory_space<smem>>
    %68 = vector.broadcast %67 : f32 to vector<4x1xf32>
    %69 = arith.addf %66, %68 : vector<4x1xf32>
    %c8_23 = arith.constant 8 : index
    %70 = memref.load %arg5[%c8_23] : memref<17xf32, #tpu.memory_space<smem>>
    %71 = vector.broadcast %70 : f32 to vector<4x1xf32>
    %72 = arith.mulf %23, %71 : vector<4x1xf32>
    %c9_24 = arith.constant 9 : index
    %73 = memref.load %arg5[%c9_24] : memref<17xf32, #tpu.memory_space<smem>>
    %74 = vector.broadcast %73 : f32 to vector<4x1xf32>
    %75 = arith.mulf %32, %74 : vector<4x1xf32>
    %76 = arith.addf %72, %75 : vector<4x1xf32>
    %c10_25 = arith.constant 10 : index
    %77 = memref.load %arg5[%c10_25] : memref<17xf32, #tpu.memory_space<smem>>
    %78 = vector.broadcast %77 : f32 to vector<4x1xf32>
    %79 = arith.mulf %41, %78 : vector<4x1xf32>
    %80 = arith.addf %76, %79 : vector<4x1xf32>
    %c13 = arith.constant 13 : index
    %81 = memref.load %arg5[%c13] : memref<17xf32, #tpu.memory_space<smem>>
    %82 = vector.broadcast %81 : f32 to vector<4x1xf32>
    %83 = arith.addf %80, %82 : vector<4x1xf32>
    %84 = arith.maximumf %55, %69 : vector<4x1xf32>
    %85 = arith.maximumf %84, %83 : vector<4x1xf32>
    %86 = arith.subf %55, %85 : vector<4x1xf32>
    %87 = math.exp %86 : vector<4x1xf32>
    %88 = arith.subf %69, %85 : vector<4x1xf32>
    %89 = math.exp %88 : vector<4x1xf32>
    %90 = arith.subf %83, %85 : vector<4x1xf32>
    %91 = math.exp %90 : vector<4x1xf32>
    %92 = arith.addf %87, %89 : vector<4x1xf32>
    %93 = arith.addf %92, %91 : vector<4x1xf32>
    %cst_26 = arith.constant 1.000000e+00 : f32
    %94 = vector.broadcast %cst_26 : f32 to vector<4x1xf32>
    %95 = arith.divf %94, %93 : vector<4x1xf32>
    %96 = arith.mulf %87, %95 : vector<4x1xf32>
    %97 = arith.mulf %89, %95 : vector<4x1xf32>
    %98 = arith.mulf %91, %95 : vector<4x1xf32>
    %99 = arith.mulf %23, %96 : vector<4x1xf32>
    %100 = arith.mulf %32, %97 : vector<4x1xf32>
    %101 = arith.addf %99, %100 : vector<4x1xf32>
    %102 = arith.mulf %41, %98 : vector<4x1xf32>
    %103 = arith.addf %101, %102 : vector<4x1xf32>
    %c14 = arith.constant 14 : index
    %104 = memref.load %arg5[%c14] : memref<17xf32, #tpu.memory_space<smem>>
    %105 = vector.broadcast %104 : f32 to vector<4x1xf32>
    %106 = arith.mulf %103, %105 : vector<4x1xf32>
    %c15 = arith.constant 15 : index
    %107 = memref.load %arg5[%c15] : memref<17xf32, #tpu.memory_space<smem>>
    %108 = vector.broadcast %107 : f32 to vector<4x1xf32>
    %109 = arith.addf %106, %108 : vector<4x1xf32>
    %c0_27 = arith.constant 0 : index
    %c0_28 = arith.constant 0 : index
    %110 = vector.load %arg6[%c0_27, %c0_28] : memref<4x8xf32, #tpu.memory_space<vmem>>, vector<4x1xf32>
    tpu.vector_store %arg6[%c0_27, %c0_28], %109 {strides = array<i32>} : memref<4x8xf32, #tpu.memory_space<vmem>>, vector<4x1xf32>,
    %c0_29 = arith.constant 0 : index
    %c1_30 = arith.constant 1 : index
    %111 = vector.load %arg6[%c0_29, %c1_30] : memref<4x8xf32, #tpu.memory_space<vmem>>, vector<4x4xf32>
    tpu.vector_store %arg6[%c0_29, %c1_30], %19 {strides = array<i32>} : memref<4x8xf32, #tpu.memory_space<vmem>>, vector<4x4xf32>,
    %c0_31 = arith.constant 0 : index
    %c5_32 = arith.constant 5 : index
    %112 = vector.load %arg6[%c0_31, %c5_32] : memref<4x8xf32, #tpu.memory_space<vmem>>, vector<4x1xf32>
    tpu.vector_store %arg6[%c0_31, %c5_32], %96 {strides = array<i32>} : memref<4x8xf32, #tpu.memory_space<vmem>>, vector<4x1xf32>,
    %c0_33 = arith.constant 0 : index
    %c6_34 = arith.constant 6 : index
    %113 = vector.load %arg6[%c0_33, %c6_34] : memref<4x8xf32, #tpu.memory_space<vmem>>, vector<4x1xf32>
    tpu.vector_store %arg6[%c0_33, %c6_34], %97 {strides = array<i32>} : memref<4x8xf32, #tpu.memory_space<vmem>>, vector<4x1xf32>,
    %c0_35 = arith.constant 0 : index
    %c7_36 = arith.constant 7 : index
    %114 = vector.load %arg6[%c0_35, %c7_36] : memref<4x8xf32, #tpu.memory_space<vmem>>, vector<4x1xf32>
    tpu.vector_store %arg6[%c0_35, %c7_36], %98 {strides = array<i32>} : memref<4x8xf32, #tpu.memory_space<vmem>>, vector<4x1xf32>,
    return
  }
  func.func @transform_0(%arg0: i32) -> (i32, i32) {
    %c0_i32 = arith.constant 0 : i32
    %c0_i32_0 = arith.constant 0 : i32
    return %arg0, %c0_i32 : i32, i32
  }
  func.func @transform_1(%arg0: i32) -> (i32, i32) {
    %c0_i32 = arith.constant 0 : i32
    %c0_i32_0 = arith.constant 0 : i32
    return %arg0, %c0_i32 : i32, i32
  }
  func.func @transform_2(%arg0: i32) -> (i32, i32) {
    %c0_i32 = arith.constant 0 : i32
    %c0_i32_0 = arith.constant 0 : i32
    return %arg0, %c0_i32 : i32, i32
  }
  func.func @transform_3(%arg0: i32) -> (i32, i32) {
    %c0_i32 = arith.constant 0 : i32
    %c0_i32_0 = arith.constant 0 : i32
    %c0_i32_1 = arith.constant 0 : i32
    return %c0_i32, %c0_i32_0 : i32, i32
  }
  func.func @transform_4(%arg0: i32) -> i32 {
    %c0_i32 = arith.constant 0 : i32
    %c0_i32_0 = arith.constant 0 : i32
    return %c0_i32 : i32
  }
  func.func @transform_5(%arg0: i32) -> (i32, i32) {
    %c0_i32 = arith.constant 0 : i32
    %c0_i32_0 = arith.constant 0 : i32
    return %arg0, %c0_i32 : i32, i32
  }
}

</mosaic_0001>

<llo_original>
// kernel: tpu_custom_call.1
$region0: #{tpu_custom_call.1}
  #allocation0 [shape = 'u32[]', space=smem, size = 0x4, offset = 0x4, fixed_abs, tag = 'smem constant byte address 0x4 - core index']
  #allocation1 [shape = 'u32[144,128]{1,0:T(1,128)}', space=vmem, size = 0x12000, scoped, tag = 'internal scratch']
  %s0 = inlined_call_operand.hbm [shape: f32[4,4], index: 0, kind: input, shape index: {}]
  %s1 = inlined_call_operand.hbm [shape: f32[4,16], index: 1, kind: input, shape index: {}]
  %s2 = inlined_call_operand.hbm [shape: f32[4,16], index: 2, kind: input, shape index: {}]
  %s3 = inlined_call_operand.hbm [shape: f32[138,128], index: 3, kind: input, shape index: {}]
  %s4 = inlined_call_operand.vmem [shape: f32[17], index: 4, kind: input, shape index: {}]
  %s5 = inlined_call_operand.hbm [shape: f32[4,8], index: 5, kind: output, shape index: {}]
  %s6 = sld [smem:[#allocation0]]
  $region50: #{tpu_custom_call.1} parent=0
    _
  %s8 = ssub.s32 1, %s6
  %s9 = scalar_select 0, %s8, %s6
  $region1: #{tpu_custom_call.1} parent=0
    #allocation2 [shape = 'u8[2048]{0}', space=vmem, size = 0x800, scoped, tag = 'input window, operand 0, single buffered']
    #allocation3 [shape = 's32[1]{0}', space=sflag, size = 0x4, scoped, tag = 'scoped memory for tpu_custom_call.1']
    #allocation4 [shape = 's32[1]{0}', space=sflag, size = 0x4, scoped, tag = 'scoped memory for tpu_custom_call.1']
    #allocation5 [shape = 's32[1]{0}', space=sflag, size = 0x4, scoped, tag = 'scoped memory for tpu_custom_call.1']
    #allocation6 [shape = 'u8[2048]{0}', space=vmem, size = 0x800, scoped, tag = 'input window, operand 1, single buffered']
    #allocation7 [shape = 's32[1]{0}', space=sflag, size = 0x4, scoped, tag = 'scoped memory for tpu_custom_call.1']
    #allocation8 [shape = 'u8[2048]{0}', space=vmem, size = 0x800, scoped, tag = 'input window, operand 2, single buffered']
    #allocation9 [shape = 'u8[73728]{0}', space=vmem, size = 0x12000, scoped, tag = 'input window, operand 3, single buffered']
    #allocation10 [shape = 's32[1]{0}', space=sflag, size = 0x4, scoped, tag = 'scoped memory for tpu_custom_call.1']
    #allocation11 [shape = 'u8[512]{0}', space=smem, size = 0x200, scoped, tag = 'input window, operand 4, single buffered']
    #allocation12 [shape = 'u8[2048]{0}', space=vmem, size = 0x800, scoped, tag = 'output window, operand 0, single buffered']
    %10 = vsyncpa [#allocation3], 0
    %11 = vsyncpa [#allocation7], 0
    %12 = vsyncpa [#allocation10], 0
    %13 = vsyncpa [#allocation5], 0
    %14 = vsyncpa [#allocation4], 0
    // Predicated region
    $region2: #{tpu_custom_call.1} parent=1 // pred_check
      _
    $region3: #{tpu_custom_call.1} parent=1 // pred_check_branch
      %16 = sbr.rel (0) target = $region5
    $region4: #{tpu_custom_call.1} parent=1 // pred_region
      %s18 = ssub.s32 64, 64
      %19 = vsyncadd [#allocation3], %s18
      %s21 = sshll.u32 [#allocation2], 4
      %s22 = int_to_ptr.vmem [resolvable:$true] %s21
      %24 = dma.hbm_to_vmem [thread:$0]  %s0, 64, %s22, [#allocation3]
    $region5: #{tpu_custom_call.1} parent=1 // pred_fallthru
      _
    // Predicated region
    $region6: #{tpu_custom_call.1} parent=1 // pred_check
      _
    $region7: #{tpu_custom_call.1} parent=1 // pred_check_branch
      %26 = sbr.rel (0) target = $region9
    $region8: #{tpu_custom_call.1} parent=1 // pred_region
      %s28 = ssub.s32 64, 64
      %29 = vsyncadd [#allocation7], %s28
      %s31 = sshll.u32 [#allocation6], 4
      %s32 = int_to_ptr.vmem [resolvable:$true] %s31
      %34 = dma.hbm_to_vmem [thread:$0]  %s1, 64, %s32, [#allocation7]
    $region9: #{tpu_custom_call.1} parent=1 // pred_fallthru
      _
    // Predicated region
    $region10: #{tpu_custom_call.1} parent=1 // pred_check
      _
    $region11: #{tpu_custom_call.1} parent=1 // pred_check_branch
      %36 = sbr.rel (0) target = $region13
    $region12: #{tpu_custom_call.1} parent=1 // pred_region
      %s38 = ssub.s32 64, 64
      %39 = vsyncadd [#allocation7], %s38
      %s41 = sshll.u32 [#allocation8], 4
      %s42 = int_to_ptr.vmem [resolvable:$true] %s41
      %44 = dma.hbm_to_vmem [thread:$0]  %s2, 64, %s42, [#allocation7]
    $region13: #{tpu_custom_call.1} parent=1 // pred_fallthru
      _
    // Predicated region
    $region14: #{tpu_custom_call.1} parent=1 // pred_check
      _
    $region15: #{tpu_custom_call.1} parent=1 // pred_check_branch
      %46 = sbr.rel (0) target = $region17
    $region16: #{tpu_custom_call.1} parent=1 // pred_region
      %s48 = ssub.s32 2304, 2304
      %49 = vsyncadd [#allocation10], %s48
      %s50 = sshll.u32 [#allocation9], 4
      %s51 = int_to_ptr.vmem [resolvable:$true] %s50
      %56 = dma.hbm_to_vmem [thread:$0]  %s3, 2304, %s51, [#allocation10], 128, 128, 8
    $region17: #{tpu_custom_call.1} parent=1 // pred_fallthru
      _
    // Predicated region
    $region18: #{tpu_custom_call.1} parent=1 // pred_check
      _
    $region19: #{tpu_custom_call.1} parent=1 // pred_check_branch
      %58 = sbr.rel (0) target = $region21
    $region20: #{tpu_custom_call.1} parent=1 // pred_region
      %s60 = ssub.s32 16, 16
      %61 = vsyncadd [#allocation5], %s60
      %s63 = sshll.u32 %s4, 4
      %s64 = int_to_ptr.vmem [resolvable:$true] %s63
      %66 = dma.vmem_to_smem %s64, 16, [#allocation11], [#allocation5]
    $region21: #{tpu_custom_call.1} parent=1 // pred_fallthru
      _
    // Predicated region
    $region22: #{tpu_custom_call.1} parent=1 // pred_check
      _
    $region23: #{tpu_custom_call.1} parent=1 // pred_check_branch
      %68 = sbr.rel (0) target = $region25
    $region24: #{tpu_custom_call.1} parent=1 // pred_region
      %69 = dma.done [#allocation3], 64
    $region25: #{tpu_custom_call.1} parent=1 // pred_fallthru
      _
    // Predicated region
    $region26: #{tpu_custom_call.1} parent=1 // pred_check
      _
    $region27: #{tpu_custom_call.1} parent=1 // pred_check_branch
      %71 = sbr.rel (0) target = $region29
    $region28: #{tpu_custom_call.1} parent=1 // pred_region
      %72 = dma.done [#allocation7], 64
    $region29: #{tpu_custom_call.1} parent=1 // pred_fallthru
      _
    // Predicated region
    $region30: #{tpu_custom_call.1} parent=1 // pred_check
      _
    $region31: #{tpu_custom_call.1} parent=1 // pred_check_branch
      %74 = sbr.rel (0) target = $region33
    $region32: #{tpu_custom_call.1} parent=1 // pred_region
      %75 = dma.done [#allocation7], 64
    $region33: #{tpu_custom_call.1} parent=1 // pred_fallthru
      _
    // Predicated region
    $region34: #{tpu_custom_call.1} parent=1 // pred_check
      _
    $region35: #{tpu_custom_call.1} parent=1 // pred_check_branch
      %77 = sbr.rel (0) target = $region37
    $region36: #{tpu_custom_call.1} parent=1 // pred_region
      %78 = dma.done [#allocation10], 2304
    $region37: #{tpu_custom_call.1} parent=1 // pred_fallthru
      _
    // Predicated region
    $region38: #{tpu_custom_call.1} parent=1 // pred_check
      _
    $region39: #{tpu_custom_call.1} parent=1 // pred_check_branch
      %80 = sbr.rel (0) target = $region41
    $region40: #{tpu_custom_call.1} parent=1 // pred_region
      %81 = dma.done [#allocation5], 16
    $region41: #{tpu_custom_call.1} parent=1 // pred_fallthru
      _
    %82 = sfence
    %v83 = vld [vmem:[#allocation2] sm:$0xf]
    %v84 = vld [vmem:[#allocation9] sm:$0xf]
    %vm85 = vcmask 31744
    %v87 = vsel %vm85, %v83, 0
    %vm89 = vcmask 1043456
    %v91 = vsel %vm89, %v84, 0
    %93 = vmatprep.subr.mxu0 0.0
    %94 = vmatpush1.msra.mxu0 0.0
    %95 = vmatprep.subr.mxu0 0.0
    %96 = vmatpush1.msra.mxu0 0.0
    %97 = vmatprep.subr.mxu0 0.0
    %98 = vmatpush1.msra.mxu0 0.0
    %99 = vmatprep.subr.mxu0 0.0
    %100 = vmatpush1.msra.mxu0 0.0
    %101 = vmatprep.subr.mxu0 0.0
    %102 = vmatpush1.msra.mxu0 0.0
    %103 = vmatprep.subr.mxu0 0.0
    %104 = vmatpush1.msra.mxu0 0.0
    %105 = vmatprep.subr.mxu0 0.0
    %106 = vmatpush1.msra.mxu0 0.0
    %107 = vmatprep.subr.mxu0 0.0
    %108 = vmatpush1.msra.mxu0 0.0
    %109 = vmatprep.subr.mxu0 0.0
    %110 = vmatpush1.msra.mxu0 0.0
    %111 = vmatprep.subr.mxu0 0.0
    %112 = vmatpush1.msra.mxu0 0.0
    %113 = vmatprep.subr.mxu0 0.0
    %114 = vmatpush1.msra.mxu0 0.0
    %115 = vmatprep.subr.mxu0 0.0
    %116 = vmatpush1.msra.mxu0 0.0
    %117 = vmatprep.subr.mxu0 0.0
    %118 = vmatpush1.msra.mxu0 0.0
    %119 = vmatprep.subr.mxu0 0.0
    %120 = vmatpush1.msra.mxu0 0.0
    %121 = vmatprep.subr.mxu0 0.0
    %122 = vmatpush1.msra.mxu0 0.0
    %123 = vmatprep.subr.mxu0 0.0
    %v124 = vand.u32 %v91, 4294901760
    %125 = vmatpush1.msra.mxu0 %v124
    %126 = vmatprep.subr.mxu0 0.0
    %127 = vmatpush2.msra.mxu0 0.0
    %128 = vmatprep.subr.mxu0 0.0
    %129 = vmatpush2.msra.mxu0 0.0
    %130 = vmatprep.subr.mxu0 0.0
    %131 = vmatpush2.msra.mxu0 0.0
    %132 = vmatprep.subr.mxu0 0.0
    %133 = vmatpush2.msra.mxu0 0.0
    %134 = vmatprep.subr.mxu0 0.0
    %135 = vmatpush2.msra.mxu0 0.0
    %136 = vmatprep.subr.mxu0 0.0
    %137 = vmatpush2.msra.mxu0 0.0
    %138 = vmatprep.subr.mxu0 0.0
    %139 = vmatpush2.msra.mxu0 0.0
    %140 = vmatprep.subr.mxu0 0.0
    %141 = vmatpush2.msra.mxu0 0.0
    %142 = vmatprep.subr.mxu0 0.0
    %143 = vmatpush2.msra.mxu0 0.0
    %144 = vmatprep.subr.mxu0 0.0
    %145 = vmatpush2.msra.mxu0 0.0
    %146 = vmatprep.subr.mxu0 0.0
    %147 = vmatpush2.msra.mxu0 0.0
    %148 = vmatprep.subr.mxu0 0.0
    %149 = vmatpush2.msra.mxu0 0.0
    %150 = vmatprep.subr.mxu0 0.0
    %151 = vmatpush2.msra.mxu0 0.0
    %152 = vmatprep.subr.mxu0 0.0
    %153 = vmatpush2.msra.mxu0 0.0
    %154 = vmatprep.subr.mxu0 0.0
    %155 = vmatpush2.msra.mxu0 0.0
    %156 = vmatprep.subr.mxu0 0.0
    %157 = vmatpush2.msra.mxu0 0.0
    %158 = vmatprep.mubr.f32.mxu0 0.0
    %v159 = vand.u32 %v87, 4294901760
    %v160 = vsub.f32 %v87, %v159
    %v161 = vand.u32 %v160, 4294901760
    %v162 = vsub.f32 %v160, %v161
    %v163 = vand.u32 %v162, 4294901760
    %164 = vmatmul.mubr.f32.gmra.mxu0 %v163
    %v165 = vpop.f32.mrf.mxu0
    %v166 = vadd.f32 0.0, %v165
    %v167 = vpop.f32.mrf.mxu0
    %168 = vdwg.mxu0
    %169 = vmatprep.subr.mxu0 0.0
    %170 = vmatpush1.msra.mxu0 0.0
    %171 = vmatprep.subr.mxu0 0.0
    %172 = vmatpush1.msra.mxu0 0.0
    %173 = vmatprep.subr.mxu0 0.0
    %174 = vmatpush1.msra.mxu0 0.0
    %175 = vmatprep.subr.mxu0 0.0
    %176 = vmatpush1.msra.mxu0 0.0
    %177 = vmatprep.subr.mxu0 0.0
    %178 = vmatpush1.msra.mxu0 0.0
    %179 = vmatprep.subr.mxu0 0.0
    %180 = vmatpush1.msra.mxu0 0.0
    %181 = vmatprep.subr.mxu0 0.0
    %182 = vmatpush1.msra.mxu0 0.0
    %183 = vmatprep.subr.mxu0 0.0
    %184 = vmatpush1.msra.mxu0 0.0
    %185 = vmatprep.subr.mxu0 0.0
    %186 = vmatpush1.msra.mxu0 0.0
    %187 = vmatprep.subr.mxu0 0.0
    %188 = vmatpush1.msra.mxu0 0.0
    %189 = vmatprep.subr.mxu0 0.0
    %190 = vmatpush1.msra.mxu0 0.0
    %191 = vmatprep.subr.mxu0 0.0
    %192 = vmatpush1.msra.mxu0 0.0
    %193 = vmatprep.subr.mxu0 0.0
    %194 = vmatpush1.msra.mxu0 0.0
    %195 = vmatprep.subr.mxu0 0.0
    %196 = vmatpush1.msra.mxu0 0.0
    %197 = vmatprep.subr.mxu0 0.0
    %198 = vmatpush1.msra.mxu0 0.0
    %199 = vmatprep.subr.mxu0 0.0
    %v200 = vand.u32 %v91, 4294901760
    %v201 = vsub.f32 %v91, %v200
    %v202 = vand.u32 %v201, 4294901760
    %v203 = vsub.f32 %v201, %v202
    %v204 = vand.u32 %v203, 4294901760
    %205 = vmatpush1.msra.mxu0 %v204
    %206 = vmatprep.subr.mxu0 0.0
    %207 = vmatpush2.msra.mxu0 0.0
    %208 = vmatprep.subr.mxu0 0.0
    %209 = vmatpush2.msra.mxu0 0.0
    %210 = vmatprep.subr.mxu0 0.0
    %211 = vmatpush2.msra.mxu0 0.0
    %212 = vmatprep.subr.mxu0 0.0
    %213 = vmatpush2.msra.mxu0 0.0
    %214 = vmatprep.subr.mxu0 0.0
    %215 = vmatpush2.msra.mxu0 0.0
    %216 = vmatprep.subr.mxu0 0.0
    %217 = vmatpush2.msra.mxu0 0.0
    %218 = vmatprep.subr.mxu0 0.0
    %219 = vmatpush2.msra.mxu0 0.0
    %220 = vmatprep.subr.mxu0 0.0
    %221 = vmatpush2.msra.mxu0 0.0
    %222 = vmatprep.subr.mxu0 0.0
    %223 = vmatpush2.msra.mxu0 0.0
    %224 = vmatprep.subr.mxu0 0.0
    %225 = vmatpush2.msra.mxu0 0.0
    %226 = vmatprep.subr.mxu0 0.0
    %227 = vmatpush2.msra.mxu0 0.0
    %228 = vmatprep.subr.mxu0 0.0
    %229 = vmatpush2.msra.mxu0 0.0
    %230 = vmatprep.subr.mxu0 0.0
    %231 = vmatpush2.msra.mxu0 0.0
    %232 = vmatprep.subr.mxu0 0.0
    %233 = vmatpush2.msra.mxu0 0.0
    %234 = vmatprep.subr.mxu0 0.0
    %235 = vmatpush2.msra.mxu0 0.0
    %236 = vmatprep.subr.mxu0 0.0
    %237 = vmatpush2.msra.mxu0 0.0
    %238 = vmatprep.mubr.f32.mxu0 0.0
    %v239 = vand.u32 %v87, 4294901760
    %240 = vmatmul.mubr.f32.gmra.mxu0 %v239
    %v241 = vpop.f32.mrf.mxu0
    %v242 = vadd.f32 %v166, %v241
    %v243 = vpop.f32.mrf.mxu0
    %244 = vdwg.mxu0
    %245 = vmatprep.subr.mxu0 0.0
    %246 = vmatpush1.msra.mxu0 0.0
    %247 = vmatprep.subr.mxu0 0.0
    %248 = vmatpush1.msra.mxu0 0.0
    %249 = vmatprep.subr.mxu0 0.0
    %250 = vmatpush1.msra.mxu0 0.0
    %251 = vmatprep.subr.mxu0 0.0
    %252 = vmatpush1.msra.mxu0 0.0
    %253 = vmatprep.subr.mxu0 0.0
    %254 = vmatpush1.msra.mxu0 0.0
    %255 = vmatprep.subr.mxu0 0.0
    %256 = vmatpush1.msra.mxu0 0.0
    %257 = vmatprep.subr.mxu0 0.0
    %258 = vmatpush1.msra.mxu0 0.0
    %259 = vmatprep.subr.mxu0 0.0
    %260 = vmatpush1.msra.mxu0 0.0
    %261 = vmatprep.subr.mxu0 0.0
    %262 = vmatpush1.msra.mxu0 0.0
    %263 = vmatprep.subr.mxu0 0.0
    %264 = vmatpush1.msra.mxu0 0.0
    %265 = vmatprep.subr.mxu0 0.0
    %266 = vmatpush1.msra.mxu0 0.0
    %267 = vmatprep.subr.mxu0 0.0
    %268 = vmatpush1.msra.mxu0 0.0
    %269 = vmatprep.subr.mxu0 0.0
    %270 = vmatpush1.msra.mxu0 0.0
    %271 = vmatprep.subr.mxu0 0.0
    %272 = vmatpush1.msra.mxu0 0.0
    %273 = vmatprep.subr.mxu0 0.0
    %274 = vmatpush1.msra.mxu0 0.0
    %275 = vmatprep.subr.mxu0 0.0
    %v276 = vand.u32 %v91, 4294901760
    %v277 = vsub.f32 %v91, %v276
    %278 = vmatpush1.msra.mxu0 %v277
    %279 = vmatprep.subr.mxu0 0.0
    %280 = vmatpush2.msra.mxu0 0.0
    %281 = vmatprep.subr.mxu0 0.0
    %282 = vmatpush2.msra.mxu0 0.0
    %283 = vmatprep.subr.mxu0 0.0
    %284 = vmatpush2.msra.mxu0 0.0
    %285 = vmatprep.subr.mxu0 0.0
    %286 = vmatpush2.msra.mxu0 0.0
    %287 = vmatprep.subr.mxu0 0.0
    %288 = vmatpush2.msra.mxu0 0.0
    %289 = vmatprep.subr.mxu0 0.0
    %290 = vmatpush2.msra.mxu0 0.0
    %291 = vmatprep.subr.mxu0 0.0
    %292 = vmatpush2.msra.mxu0 0.0
    %293 = vmatprep.subr.mxu0 0.0
    %294 = vmatpush2.msra.mxu0 0.0
    %295 = vmatprep.subr.mxu0 0.0
    %296 = vmatpush2.msra.mxu0 0.0
    %297 = vmatprep.subr.mxu0 0.0
    %298 = vmatpush2.msra.mxu0 0.0
    %299 = vmatprep.subr.mxu0 0.0
    %300 = vmatpush2.msra.mxu0 0.0
    %301 = vmatprep.subr.mxu0 0.0
    %302 = vmatpush2.msra.mxu0 0.0
    %303 = vmatprep.subr.mxu0 0.0
    %304 = vmatpush2.msra.mxu0 0.0
    %305 = vmatprep.subr.mxu0 0.0
    %306 = vmatpush2.msra.mxu0 0.0
    %307 = vmatprep.subr.mxu0 0.0
    %308 = vmatpush2.msra.mxu0 0.0
    %309 = vmatprep.subr.mxu0 0.0
    %310 = vmatpush2.msra.mxu0 0.0
    %311 = vmatprep.mubr.f32.mxu0 0.0
    %v312 = vand.u32 %v87, 4294901760
    %v313 = vsub.f32 %v87, %v312
    %314 = vmatmul.mubr.f32.gmra.mxu0 %v313
    %v315 = vpop.f32.mrf.mxu0
    %v316 = vadd.f32 %v242, %v315
    %v317 = vpop.f32.mrf.mxu0
    %318 = vdwg.mxu0
    %319 = vmatprep.subr.mxu0 0.0
    %320 = vmatpush1.msra.mxu0 0.0
    %321 = vmatprep.subr.mxu0 0.0
    %322 = vmatpush1.msra.mxu0 0.0
    %323 = vmatprep.subr.mxu0 0.0
    %324 = vmatpush1.msra.mxu0 0.0
    %325 = vmatprep.subr.mxu0 0.0
    %326 = vmatpush1.msra.mxu0 0.0
    %327 = vmatprep.subr.mxu0 0.0
    %328 = vmatpush1.msra.mxu0 0.0
    %329 = vmatprep.subr.mxu0 0.0
    %330 = vmatpush1.msra.mxu0 0.0
    %331 = vmatprep.subr.mxu0 0.0
    %332 = vmatpush1.msra.mxu0 0.0
    %333 = vmatprep.subr.mxu0 0.0
    %334 = vmatpush1.msra.mxu0 0.0
    %335 = vmatprep.subr.mxu0 0.0
    %336 = vmatpush1.msra.mxu0 0.0
    %337 = vmatprep.subr.mxu0 0.0
    %338 = vmatpush1.msra.mxu0 0.0
    %339 = vmatprep.subr.mxu0 0.0
    %340 = vmatpush1.msra.mxu0 0.0
    %341 = vmatprep.subr.mxu0 0.0
    %342 = vmatpush1.msra.mxu0 0.0
    %343 = vmatprep.subr.mxu0 0.0
    %344 = vmatpush1.msra.mxu0 0.0
    %345 = vmatprep.subr.mxu0 0.0
    %346 = vmatpush1.msra.mxu0 0.0
    %347 = vmatprep.subr.mxu0 0.0
    %348 = vmatpush1.msra.mxu0 0.0
    %349 = vmatprep.subr.mxu0 0.0
    %v350 = vand.u32 %v91, 4294901760
    %351 = vmatpush1.msra.mxu0 %v350
    %352 = vmatprep.subr.mxu0 0.0
    %353 = vmatpush2.msra.mxu0 0.0
    %354 = vmatprep.subr.mxu0 0.0
    %355 = vmatpush2.msra.mxu0 0.0
    %356 = vmatprep.subr.mxu0 0.0
    %357 = vmatpush2.msra.mxu0 0.0
    %358 = vmatprep.subr.mxu0 0.0
    %359 = vmatpush2.msra.mxu0 0.0
    %360 = vmatprep.subr.mxu0 0.0
    %361 = vmatpush2.msra.mxu0 0.0
    %362 = vmatprep.subr.mxu0 0.0
    %363 = vmatpush2.msra.mxu0 0.0
    %364 = vmatprep.subr.mxu0 0.0
    %365 = vmatpush2.msra.mxu0 0.0
    %366 = vmatprep.subr.mxu0 0.0
    %367 = vmatpush2.msra.mxu0 0.0
    %368 = vmatprep.subr.mxu0 0.0
    %369 = vmatpush2.msra.mxu0 0.0
    %370 = vmatprep.subr.mxu0 0.0
    %371 = vmatpush2.msra.mxu0 0.0
    %372 = vmatprep.subr.mxu0 0.0
    %373 = vmatpush2.msra.mxu0 0.0
    %374 = vmatprep.subr.mxu0 0.0
    %375 = vmatpush2.msra.mxu0 0.0
    %376 = vmatprep.subr.mxu0 0.0
    %377 = vmatpush2.msra.mxu0 0.0
    %378 = vmatprep.subr.mxu0 0.0
    %379 = vmatpush2.msra.mxu0 0.0
    %380 = vmatprep.subr.mxu0 0.0
    %381 = vmatpush2.msra.mxu0 0.0
    %382 = vmatprep.subr.mxu0 0.0
    %383 = vmatpush2.msra.mxu0 0.0
    %384 = vmatprep.mubr.f32.mxu0 0.0
    %v385 = vand.u32 %v87, 4294901760
    %v386 = vsub.f32 %v87, %v385
    %v387 = vand.u32 %v386, 4294901760
    %388 = vmatmul.mubr.f32.gmra.mxu0 %v387
    %v389 = vpop.f32.mrf.mxu0
    %v390 = vadd.f32 %v316, %v389
    %v391 = vpop.f32.mrf.mxu0
    %392 = vdwg.mxu0
    %393 = vmatprep.subr.mxu0 0.0
    %394 = vmatpush1.msra.mxu0 0.0
    %395 = vmatprep.subr.mxu0 0.0
    %396 = vmatpush1.msra.mxu0 0.0
    %397 = vmatprep.subr.mxu0 0.0
    %398 = vmatpush1.msra.mxu0 0.0
    %399 = vmatprep.subr.mxu0 0.0
    %400 = vmatpush1.msra.mxu0 0.0
    %401 = vmatprep.subr.mxu0 0.0
    %402 = vmatpush1.msra.mxu0 0.0
    %403 = vmatprep.subr.mxu0 0.0
    %404 = vmatpush1.msra.mxu0 0.0
    %405 = vmatprep.subr.mxu0 0.0
    %406 = vmatpush1.msra.mxu0 0.0
    %407 = vmatprep.subr.mxu0 0.0
    %408 = vmatpush1.msra.mxu0 0.0
    %409 = vmatprep.subr.mxu0 0.0
    %410 = vmatpush1.msra.mxu0 0.0
    %411 = vmatprep.subr.mxu0 0.0
    %412 = vmatpush1.msra.mxu0 0.0
    %413 = vmatprep.subr.mxu0 0.0
    %414 = vmatpush1.msra.mxu0 0.0
    %415 = vmatprep.subr.mxu0 0.0
    %416 = vmatpush1.msra.mxu0 0.0
    %417 = vmatprep.subr.mxu0 0.0
    %418 = vmatpush1.msra.mxu0 0.0
    %419 = vmatprep.subr.mxu0 0.0
    %420 = vmatpush1.msra.mxu0 0.0
    %421 = vmatprep.subr.mxu0 0.0
    %422 = vmatpush1.msra.mxu0 0.0
    %423 = vmatprep.subr.mxu0 0.0
    %v424 = vand.u32 %v91, 4294901760
    %v425 = vsub.f32 %v91, %v424
    %v426 = vand.u32 %v425, 4294901760
    %427 = vmatpush1.msra.mxu0 %v426
    %428 = vmatprep.subr.mxu0 0.0
    %429 = vmatpush2.msra.mxu0 0.0
    %430 = vmatprep.subr.mxu0 0.0
    %431 = vmatpush2.msra.mxu0 0.0
    %432 = vmatprep.subr.mxu0 0.0
    %433 = vmatpush2.msra.mxu0 0.0
    %434 = vmatprep.subr.mxu0 0.0
    %435 = vmatpush2.msra.mxu0 0.0
    %436 = vmatprep.subr.mxu0 0.0
    %437 = vmatpush2.msra.mxu0 0.0
    %438 = vmatprep.subr.mxu0 0.0
    %439 = vmatpush2.msra.mxu0 0.0
    %440 = vmatprep.subr.mxu0 0.0
    %441 = vmatpush2.msra.mxu0 0.0
    %442 = vmatprep.subr.mxu0 0.0
    %443 = vmatpush2.msra.mxu0 0.0
    %444 = vmatprep.subr.mxu0 0.0
    %445 = vmatpush2.msra.mxu0 0.0
    %446 = vmatprep.subr.mxu0 0.0
    %447 = vmatpush2.msra.mxu0 0.0
    %448 = vmatprep.subr.mxu0 0.0
    %449 = vmatpush2.msra.mxu0 0.0
    %450 = vmatprep.subr.mxu0 0.0
    %451 = vmatpush2.msra.mxu0 0.0
    %452 = vmatprep.subr.mxu0 0.0
    %453 = vmatpush2.msra.mxu0 0.0
    %454 = vmatprep.subr.mxu0 0.0
    %455 = vmatpush2.msra.mxu0 0.0
    %456 = vmatprep.subr.mxu0 0.0
    %457 = vmatpush2.msra.mxu0 0.0
    %458 = vmatprep.subr.mxu0 0.0
    %459 = vmatpush2.msra.mxu0 0.0
    %460 = vmatprep.mubr.f32.mxu0 0.0
    %v461 = vand.u32 %v87, 4294901760
    %462 = vmatmul.mubr.f32.gmra.mxu0 %v461
    %v463 = vpop.f32.mrf.mxu0
    %v464 = vadd.f32 %v390, %v463
    %v465 = vpop.f32.mrf.mxu0
    %466 = vdwg.mxu0
    %467 = vmatprep.subr.mxu0 0.0
    %468 = vmatpush1.msra.mxu0 0.0
    %469 = vmatprep.subr.mxu0 0.0
    %470 = vmatpush1.msra.mxu0 0.0
    %471 = vmatprep.subr.mxu0 0.0
    %472 = vmatpush1.msra.mxu0 0.0
    %473 = vmatprep.subr.mxu0 0.0
    %474 = vmatpush1.msra.mxu0 0.0
    %475 = vmatprep.subr.mxu0 0.0
    %476 = vmatpush1.msra.mxu0 0.0
    %477 = vmatprep.subr.mxu0 0.0
    %478 = vmatpush1.msra.mxu0 0.0
    %479 = vmatprep.subr.mxu0 0.0
    %480 = vmatpush1.msra.mxu0 0.0
    %481 = vmatprep.subr.mxu0 0.0
    %482 = vmatpush1.msra.mxu0 0.0
    %483 = vmatprep.subr.mxu0 0.0
    %484 = vmatpush1.msra.mxu0 0.0
    %485 = vmatprep.subr.mxu0 0.0
    %486 = vmatpush1.msra.mxu0 0.0
    %487 = vmatprep.subr.mxu0 0.0
    %488 = vmatpush1.msra.mxu0 0.0
    %489 = vmatprep.subr.mxu0 0.0
    %490 = vmatpush1.msra.mxu0 0.0
    %491 = vmatprep.subr.mxu0 0.0
    %492 = vmatpush1.msra.mxu0 0.0
    %493 = vmatprep.subr.mxu0 0.0
    %494 = vmatpush1.msra.mxu0 0.0
    %495 = vmatprep.subr.mxu0 0.0
    %496 = vmatpush1.msra.mxu0 0.0
    %497 = vmatprep.subr.mxu0 0.0
    %v498 = vand.u32 %v91, 4294901760
    %499 = vmatpush1.msra.mxu0 %v498
    %500 = vmatprep.subr.mxu0 0.0
    %501 = vmatpush2.msra.mxu0 0.0
    %502 = vmatprep.subr.mxu0 0.0
    %503 = vmatpush2.msra.mxu0 0.0
    %504 = vmatprep.subr.mxu0 0.0
    %505 = vmatpush2.msra.mxu0 0.0
    %506 = vmatprep.subr.mxu0 0.0
    %507 = vmatpush2.msra.mxu0 0.0
    %508 = vmatprep.subr.mxu0 0.0
    %509 = vmatpush2.msra.mxu0 0.0
    %510 = vmatprep.subr.mxu0 0.0
    %511 = vmatpush2.msra.mxu0 0.0
    %512 = vmatprep.subr.mxu0 0.0
    %513 = vmatpush2.msra.mxu0 0.0
    %514 = vmatprep.subr.mxu0 0.0
    %515 = vmatpush2.msra.mxu0 0.0
    %516 = vmatprep.subr.mxu0 0.0
    %517 = vmatpush2.msra.mxu0 0.0
    %518 = vmatprep.subr.mxu0 0.0
    %519 = vmatpush2.msra.mxu0 0.0
    %520 = vmatprep.subr.mxu0 0.0
    %521 = vmatpush2.msra.mxu0 0.0
    %522 = vmatprep.subr.mxu0 0.0
    %523 = vmatpush2.msra.mxu0 0.0
    %524 = vmatprep.subr.mxu0 0.0
    %525 = vmatpush2.msra.mxu0 0.0
    %526 = vmatprep.subr.mxu0 0.0
    %527 = vmatpush2.msra.mxu0 0.0
    %528 = vmatprep.subr.mxu0 0.0
    %529 = vmatpush2.msra.mxu0 0.0
    %530 = vmatprep.subr.mxu0 0.0
    %531 = vmatpush2.msra.mxu0 0.0
    %532 = vmatprep.mubr.f32.mxu0 0.0
    %v533 = vand.u32 %v87, 4294901760
    %534 = vmatmul.mubr.f32.gmra.mxu0 %v533
    %v535 = vpop.f32.mrf.mxu0
    %v536 = vadd.f32 %v464, %v535
    %v537 = vpop.f32.mrf.mxu0
    %538 = vdwg.mxu0
    %v539 = vld [vmem:[#allocation9 + $0x4] sm:$0x1]
    %v540 = vld [vmem:[#allocation9 + $0x5] sm:$0x1]
    %v541 = vld [vmem:[#allocation9 + $0x6] sm:$0x1]
    %v542 = vlaneseq
    %v543 = vshrl.u32 %v542, 7
    %v544 = vsub.s32 0, %v543
    %v545 = vrot.slane %v539, %v544
    %v546 = vmul.f32 %v536, %v545
    %v547 = vlaneseq
    %v548 = vshrl.u32 %v547, 7
    %v549 = vsub.s32 0, %v548
    %v550 = vrot.slane %v540, %v549
    %v551 = vadd.f32 %v546, %v550
    %v552 = vmax.f32 %v551, 0.0
    %v553 = vlaneseq
    %v554 = vshrl.u32 %v553, 7
    %v555 = vsub.s32 0, %v554
    %v556 = vrot.slane %v541, %v555
    %v557 = vmul.f32 %v552, %v556
    %v558 = vld [vmem:[#allocation9 + $0xa] sm:$0xff]
    %v559 = vld [vmem:[#allocation9 + $0x12] sm:$0xff]
    %v560 = vld [vmem:[#allocation9 + $0x1a] sm:$0xff]
    %v561 = vld [vmem:[#allocation9 + $0x22] sm:$0xff]
    %v562 = vld [vmem:[#allocation9 + $0x2a] sm:$0xff]
    %v563 = vld [vmem:[#allocation9 + $0x32] sm:$0xff]
    %v564 = vld [vmem:[#allocation9 + $0x3a] sm:$0xff]
    %v565 = vld [vmem:[#allocation9 + $0x42] sm:$0xff]
    %v566 = vld [vmem:[#allocation9 + $0x4a] sm:$0xff]
    %v567 = vld [vmem:[#allocation9 + $0x52] sm:$0xff]
    %v568 = vld [vmem:[#allocation9 + $0x5a] sm:$0xff]
    %v569 = vld [vmem:[#allocation9 + $0x62] sm:$0xff]
    %v570 = vld [vmem:[#allocation9 + $0x6a] sm:$0xff]
    %v571 = vld [vmem:[#allocation9 + $0x72] sm:$0xff]
    %v572 = vld [vmem:[#allocation9 + $0x7a] sm:$0xff]
    %v573 = vld [vmem:[#allocation9 + $0x82] sm:$0xff]
    %574 = vmatprep.subr.mxu0 0.0
    %v575 = vand.u32 %v573, 4294901760
    %576 = vmatpush1.msra.mxu0 %v575
    %577 = vmatprep.subr.mxu0 0.0
    %v578 = vand.u32 %v572, 4294901760
    %579 = vmatpush1.msra.mxu0 %v578
    %580 = vmatprep.subr.mxu0 0.0
    %v581 = vand.u32 %v571, 4294901760
    %582 = vmatpush1.msra.mxu0 %v581
    %583 = vmatprep.subr.mxu0 0.0
    %v584 = vand.u32 %v570, 4294901760
    %585 = vmatpush1.msra.mxu0 %v584
    %586 = vmatprep.subr.mxu0 0.0
    %v587 = vand.u32 %v569, 4294901760
    %588 = vmatpush1.msra.mxu0 %v587
    %589 = vmatprep.subr.mxu0 0.0
    %v590 = vand.u32 %v568, 4294901760
    %591 = vmatpush1.msra.mxu0 %v590
    %592 = vmatprep.subr.mxu0 0.0
    %v593 = vand.u32 %v567, 4294901760
    %594 = vmatpush1.msra.mxu0 %v593
    %595 = vmatprep.subr.mxu0 0.0
    %v596 = vand.u32 %v566, 4294901760
    %597 = vmatpush1.msra.mxu0 %v596
    %598 = vmatprep.subr.mxu0 0.0
    %v599 = vand.u32 %v565, 4294901760
    %600 = vmatpush1.msra.mxu0 %v599
    %601 = vmatprep.subr.mxu0 0.0
    %v602 = vand.u32 %v564, 4294901760
    %603 = vmatpush1.msra.mxu0 %v602
    %604 = vmatprep.subr.mxu0 0.0
    %v605 = vand.u32 %v563, 4294901760
    %606 = vmatpush1.msra.mxu0 %v605
    %607 = vmatprep.subr.mxu0 0.0
    %v608 = vand.u32 %v562, 4294901760
    %609 = vmatpush1.msra.mxu0 %v608
    %610 = vmatprep.subr.mxu0 0.0
    %v611 = vand.u32 %v561, 4294901760
    %612 = vmatpush1.msra.mxu0 %v611
    %613 = vmatprep.subr.mxu0 0.0
    %v614 = vand.u32 %v560, 4294901760
    %615 = vmatpush1.msra.mxu0 %v614
    %616 = vmatprep.subr.mxu0 0.0
    %v617 = vand.u32 %v559, 4294901760
    %618 = vmatpush1.msra.mxu0 %v617
    %619 = vmatprep.subr.mxu0 0.0
    %v620 = vand.u32 %v558, 4294901760
    %621 = vmatpush1.msra.mxu0 %v620
    %622 = vmatprep.subr.mxu0 0.0
    %623 = vmatpush2.msra.mxu0 0.0
    %624 = vmatprep.subr.mxu0 0.0
    %625 = vmatpush2.msra.mxu0 0.0
    %626 = vmatprep.subr.mxu0 0.0
    %627 = vmatpush2.msra.mxu0 0.0
    %628 = vmatprep.subr.mxu0 0.0
    %629 = vmatpush2.msra.mxu0 0.0
    %630 = vmatprep.subr.mxu0 0.0
    %631 = vmatpush2.msra.mxu0 0.0
    %632 = vmatprep.subr.mxu0 0.0
    %633 = vmatpush2.msra.mxu0 0.0
    %634 = vmatprep.subr.mxu0 0.0
    %635 = vmatpush2.msra.mxu0 0.0
    %636 = vmatprep.subr.mxu0 0.0
    %637 = vmatpush2.msra.mxu0 0.0
    %638 = vmatprep.subr.mxu0 0.0
    %639 = vmatpush2.msra.mxu0 0.0
    %640 = vmatprep.subr.mxu0 0.0
    %641 = vmatpush2.msra.mxu0 0.0
    %642 = vmatprep.subr.mxu0 0.0
    %643 = vmatpush2.msra.mxu0 0.0
    %644 = vmatprep.subr.mxu0 0.0
    %645 = vmatpush2.msra.mxu0 0.0
    %646 = vmatprep.subr.mxu0 0.0
    %647 = vmatpush2.msra.mxu0 0.0
    %648 = vmatprep.subr.mxu0 0.0
    %649 = vmatpush2.msra.mxu0 0.0
    %650 = vmatprep.subr.mxu0 0.0
    %651 = vmatpush2.msra.mxu0 0.0
    %652 = vmatprep.subr.mxu0 0.0
    %653 = vmatpush2.msra.mxu0 0.0
    %654 = vmatprep.mubr.f32.mxu0 0.0
    %v655 = vand.u32 %v557, 4294901760
    %v656 = vsub.f32 %v557, %v655
    %v657 = vand.u32 %v656, 4294901760
    %v658 = vsub.f32 %v656, %v657
    %v659 = vand.u32 %v658, 4294901760
    %660 = vmatmul.mubr.f32.gmra.mxu0 %v659
    %v661 = vpop.f32.mrf.mxu0
    %v662 = vadd.f32 0.0, %v661
    %v663 = vpop.f32.mrf.mxu0
    %664 = vdwg.mxu0
    %665 = vmatprep.subr.mxu0 0.0
    %v666 = vand.u32 %v573, 4294901760
    %v667 = vsub.f32 %v573, %v666
    %v668 = vand.u32 %v667, 4294901760
    %v669 = vsub.f32 %v667, %v668
    %v670 = vand.u32 %v669, 4294901760
    %671 = vmatpush1.msra.mxu0 %v670
    %672 = vmatprep.subr.mxu0 0.0
    %v673 = vand.u32 %v572, 4294901760
    %v674 = vsub.f32 %v572, %v673
    %v675 = vand.u32 %v674, 4294901760
    %v676 = vsub.f32 %v674, %v675
    %v677 = vand.u32 %v676, 4294901760
    %678 = vmatpush1.msra.mxu0 %v677
    %679 = vmatprep.subr.mxu0 0.0
    %v680 = vand.u32 %v571, 4294901760
    %v681 = vsub.f32 %v571, %v680
    %v682 = vand.u32 %v681, 4294901760
    %v683 = vsub.f32 %v681, %v682
    %v684 = vand.u32 %v683, 4294901760
    %685 = vmatpush1.msra.mxu0 %v684
    %686 = vmatprep.subr.mxu0 0.0
    %v687 = vand.u32 %v570, 4294901760
    %v688 = vsub.f32 %v570, %v687
    %v689 = vand.u32 %v688, 4294901760
    %v690 = vsub.f32 %v688, %v689
    %v691 = vand.u32 %v690, 4294901760
    %692 = vmatpush1.msra.mxu0 %v691
    %693 = vmatprep.subr.mxu0 0.0
    %v694 = vand.u32 %v569, 4294901760
    %v695 = vsub.f32 %v569, %v694
    %v696 = vand.u32 %v695, 4294901760
    %v697 = vsub.f32 %v695, %v696
    %v698 = vand.u32 %v697, 4294901760
    %699 = vmatpush1.msra.mxu0 %v698
    %700 = vmatprep.subr.mxu0 0.0
    %v701 = vand.u32 %v568, 4294901760
    %v702 = vsub.f32 %v568, %v701
    %v703 = vand.u32 %v702, 4294901760
    %v704 = vsub.f32 %v702, %v703
    %v705 = vand.u32 %v704, 4294901760
    %706 = vmatpush1.msra.mxu0 %v705
    %707 = vmatprep.subr.mxu0 0.0
    %v708 = vand.u32 %v567, 4294901760
    %v709 = vsub.f32 %v567, %v708
    %v710 = vand.u32 %v709, 4294901760
    %v711 = vsub.f32 %v709, %v710
    %v712 = vand.u32 %v711, 4294901760
    %713 = vmatpush1.msra.mxu0 %v712
    %714 = vmatprep.subr.mxu0 0.0
    %v715 = vand.u32 %v566, 4294901760
    %v716 = vsub.f32 %v566, %v715
    %v717 = vand.u32 %v716, 4294901760
    %v718 = vsub.f32 %v716, %v717
    %v719 = vand.u32 %v718, 4294901760
    %720 = vmatpush1.msra.mxu0 %v719
    %721 = vmatprep.subr.mxu0 0.0
    %v722 = vand.u32 %v565, 4294901760
    %v723 = vsub.f32 %v565, %v722
    %v724 = vand.u32 %v723, 4294901760
    %v725 = vsub.f32 %v723, %v724
    %v726 = vand.u32 %v725, 4294901760
    %727 = vmatpush1.msra.mxu0 %v726
    %728 = vmatprep.subr.mxu0 0.0
    %v729 = vand.u32 %v564, 4294901760
    %v730 = vsub.f32 %v564, %v729
    %v731 = vand.u32 %v730, 4294901760
    %v732 = vsub.f32 %v730, %v731
    %v733 = vand.u32 %v732, 4294901760
    %734 = vmatpush1.msra.mxu0 %v733
    %735 = vmatprep.subr.mxu0 0.0
    %v736 = vand.u32 %v563, 4294901760
    %v737 = vsub.f32 %v563, %v736
    %v738 = vand.u32 %v737, 4294901760
    %v739 = vsub.f32 %v737, %v738
    %v740 = vand.u32 %v739, 4294901760
    %741 = vmatpush1.msra.mxu0 %v740
    %742 = vmatprep.subr.mxu0 0.0
    %v743 = vand.u32 %v562, 4294901760
    %v744 = vsub.f32 %v562, %v743
    %v745 = vand.u32 %v744, 4294901760
    %v746 = vsub.f32 %v744, %v745
    %v747 = vand.u32 %v746, 4294901760
    %748 = vmatpush1.msra.mxu0 %v747
    %749 = vmatprep.subr.mxu0 0.0
    %v750 = vand.u32 %v561, 4294901760
    %v751 = vsub.f32 %v561, %v750
    %v752 = vand.u32 %v751, 4294901760
    %v753 = vsub.f32 %v751, %v752
    %v754 = vand.u32 %v753, 4294901760
    %755 = vmatpush1.msra.mxu0 %v754
    %756 = vmatprep.subr.mxu0 0.0
    %v757 = vand.u32 %v560, 4294901760
    %v758 = vsub.f32 %v560, %v757
    %v759 = vand.u32 %v758, 4294901760
    %v760 = vsub.f32 %v758, %v759
    %v761 = vand.u32 %v760, 4294901760
    %762 = vmatpush1.msra.mxu0 %v761
    %763 = vmatprep.subr.mxu0 0.0
    %v764 = vand.u32 %v559, 4294901760
    %v765 = vsub.f32 %v559, %v764
    %v766 = vand.u32 %v765, 4294901760
    %v767 = vsub.f32 %v765, %v766
    %v768 = vand.u32 %v767, 4294901760
    %769 = vmatpush1.msra.mxu0 %v768
    %770 = vmatprep.subr.mxu0 0.0
    %v771 = vand.u32 %v558, 4294901760
    %v772 = vsub.f32 %v558, %v771
    %v773 = vand.u32 %v772, 4294901760
    %v774 = vsub.f32 %v772, %v773
    %v775 = vand.u32 %v774, 4294901760
    %776 = vmatpush1.msra.mxu0 %v775
    %777 = vmatprep.subr.mxu0 0.0
    %778 = vmatpush2.msra.mxu0 0.0
    %779 = vmatprep.subr.mxu0 0.0
    %780 = vmatpush2.msra.mxu0 0.0
    %781 = vmatprep.subr.mxu0 0.0
    %782 = vmatpush2.msra.mxu0 0.0
    %783 = vmatprep.subr.mxu0 0.0
    %784 = vmatpush2.msra.mxu0 0.0
    %785 = vmatprep.subr.mxu0 0.0
    %786 = vmatpush2.msra.mxu0 0.0
    %787 = vmatprep.subr.mxu0 0.0
    %788 = vmatpush2.msra.mxu0 0.0
    %789 = vmatprep.subr.mxu0 0.0
    %790 = vmatpush2.msra.mxu0 0.0
    %791 = vmatprep.subr.mxu0 0.0
    %792 = vmatpush2.msra.mxu0 0.0
    %793 = vmatprep.subr.mxu0 0.0
    %794 = vmatpush2.msra.mxu0 0.0
    %795 = vmatprep.subr.mxu0 0.0
    %796 = vmatpush2.msra.mxu0 0.0
    %797 = vmatprep.subr.mxu0 0.0
    %798 = vmatpush2.msra.mxu0 0.0
    %799 = vmatprep.subr.mxu0 0.0
    %800 = vmatpush2.msra.mxu0 0.0
    %801 = vmatprep.subr.mxu0 0.0
    %802 = vmatpush2.msra.mxu0 0.0
    %803 = vmatprep.subr.mxu0 0.0
    %804 = vmatpush2.msra.mxu0 0.0
    %805 = vmatprep.subr.mxu0 0.0
    %806 = vmatpush2.msra.mxu0 0.0
    %807 = vmatprep.subr.mxu0 0.0
    %808 = vmatpush2.msra.mxu0 0.0
    %809 = vmatprep.mubr.f32.mxu0 0.0
    %v810 = vand.u32 %v557, 4294901760
    %811 = vmatmul.mubr.f32.gmra.mxu0 %v810
    %v812 = vpop.f32.mrf.mxu0
    %v813 = vadd.f32 %v662, %v812
    %v814 = vpop.f32.mrf.mxu0
    %815 = vdwg.mxu0
    %816 = vmatprep.subr.mxu0 0.0
    %v817 = vand.u32 %v573, 4294901760
    %v818 = vsub.f32 %v573, %v817
    %819 = vmatpush1.msra.mxu0 %v818
    %820 = vmatprep.subr.mxu0 0.0
    %v821 = vand.u32 %v572, 4294901760
    %v822 = vsub.f32 %v572, %v821
    %823 = vmatpush1.msra.mxu0 %v822
    %824 = vmatprep.subr.mxu0 0.0
    %v825 = vand.u32 %v571, 4294901760
    %v826 = vsub.f32 %v571, %v825
    %827 = vmatpush1.msra.mxu0 %v826
    %828 = vmatprep.subr.mxu0 0.0
    %v829 = vand.u32 %v570, 4294901760
    %v830 = vsub.f32 %v570, %v829
    %831 = vmatpush1.msra.mxu0 %v830
    %832 = vmatprep.subr.mxu0 0.0
    %v833 = vand.u32 %v569, 4294901760
    %v834 = vsub.f32 %v569, %v833
    %835 = vmatpush1.msra.mxu0 %v834
    %836 = vmatprep.subr.mxu0 0.0
    %v837 = vand.u32 %v568, 4294901760
    %v838 = vsub.f32 %v568, %v837
    %839 = vmatpush1.msra.mxu0 %v838
    %840 = vmatprep.subr.mxu0 0.0
    %v841 = vand.u32 %v567, 4294901760
    %v842 = vsub.f32 %v567, %v841
    %843 = vmatpush1.msra.mxu0 %v842
    %844 = vmatprep.subr.mxu0 0.0
    %v845 = vand.u32 %v566, 4294901760
    %v846 = vsub.f32 %v566, %v845
    %847 = vmatpush1.msra.mxu0 %v846
    %848 = vmatprep.subr.mxu0 0.0
    %v849 = vand.u32 %v565, 4294901760
    %v850 = vsub.f32 %v565, %v849
    %851 = vmatpush1.msra.mxu0 %v850
    %852 = vmatprep.subr.mxu0 0.0
    %v853 = vand.u32 %v564, 4294901760
    %v854 = vsub.f32 %v564, %v853
    %855 = vmatpush1.msra.mxu0 %v854
    %856 = vmatprep.subr.mxu0 0.0
    %v857 = vand.u32 %v563, 4294901760
    %v858 = vsub.f32 %v563, %v857
    %859 = vmatpush1.msra.mxu0 %v858
    %860 = vmatprep.subr.mxu0 0.0
    %v861 = vand.u32 %v562, 4294901760
    %v862 = vsub.f32 %v562, %v861
    %863 = vmatpush1.msra.mxu0 %v862
    %864 = vmatprep.subr.mxu0 0.0
    %v865 = vand.u32 %v561, 4294901760
    %v866 = vsub.f32 %v561, %v865
    %867 = vmatpush1.msra.mxu0 %v866
    %868 = vmatprep.subr.mxu0 0.0
    %v869 = vand.u32 %v560, 4294901760
    %v870 = vsub.f32 %v560, %v869
    %871 = vmatpush1.msra.mxu0 %v870
    %872 = vmatprep.subr.mxu0 0.0
    %v873 = vand.u32 %v559, 4294901760
    %v874 = vsub.f32 %v559, %v873
    %875 = vmatpush1.msra.mxu0 %v874
    %876 = vmatprep.subr.mxu0 0.0
    %v877 = vand.u32 %v558, 4294901760
    %v878 = vsub.f32 %v558, %v877
    %879 = vmatpush1.msra.mxu0 %v878
    %880 = vmatprep.subr.mxu0 0.0
    %881 = vmatpush2.msra.mxu0 0.0
    %882 = vmatprep.subr.mxu0 0.0
    %883 = vmatpush2.msra.mxu0 0.0
    %884 = vmatprep.subr.mxu0 0.0
    %885 = vmatpush2.msra.mxu0 0.0
    %886 = vmatprep.subr.mxu0 0.0
    %887 = vmatpush2.msra.mxu0 0.0
    %888 = vmatprep.subr.mxu0 0.0
    %889 = vmatpush2.msra.mxu0 0.0
    %890 = vmatprep.subr.mxu0 0.0
    %891 = vmatpush2.msra.mxu0 0.0
    %892 = vmatprep.subr.mxu0 0.0
    %893 = vmatpush2.msra.mxu0 0.0
    %894 = vmatprep.subr.mxu0 0.0
    %895 = vmatpush2.msra.mxu0 0.0
    %896 = vmatprep.subr.mxu0 0.0
    %897 = vmatpush2.msra.mxu0 0.0
    %898 = vmatprep.subr.mxu0 0.0
    %899 = vmatpush2.msra.mxu0 0.0
    %900 = vmatprep.subr.mxu0 0.0
    %901 = vmatpush2.msra.mxu0 0.0
    %902 = vmatprep.subr.mxu0 0.0
    %903 = vmatpush2.msra.mxu0 0.0
    %904 = vmatprep.subr.mxu0 0.0
    %905 = vmatpush2.msra.mxu0 0.0
    %906 = vmatprep.subr.mxu0 0.0
    %907 = vmatpush2.msra.mxu0 0.0
    %908 = vmatprep.subr.mxu0 0.0
    %909 = vmatpush2.msra.mxu0 0.0
    %910 = vmatprep.subr.mxu0 0.0
    %911 = vmatpush2.msra.mxu0 0.0
    %912 = vmatprep.mubr.f32.mxu0 0.0
    %v913 = vand.u32 %v557, 4294901760
    %v914 = vsub.f32 %v557, %v913
    %915 = vmatmul.mubr.f32.gmra.mxu0 %v914
    %v916 = vpop.f32.mrf.mxu0
    %v917 = vadd.f32 %v813, %v916
    %v918 = vpop.f32.mrf.mxu0
    %919 = vdwg.mxu0
    %920 = vmatprep.subr.mxu0 0.0
    %v921 = vand.u32 %v573, 4294901760
    %922 = vmatpush1.msra.mxu0 %v921
    %923 = vmatprep.subr.mxu0 0.0
    %v924 = vand.u32 %v572, 4294901760
    %925 = vmatpush1.msra.mxu0 %v924
    %926 = vmatprep.subr.mxu0 0.0
    %v927 = vand.u32 %v571, 4294901760
    %928 = vmatpush1.msra.mxu0 %v927
    %929 = vmatprep.subr.mxu0 0.0
    %v930 = vand.u32 %v570, 4294901760
    %931 = vmatpush1.msra.mxu0 %v930
    %932 = vmatprep.subr.mxu0 0.0
    %v933 = vand.u32 %v569, 4294901760
    %934 = vmatpush1.msra.mxu0 %v933
    %935 = vmatprep.subr.mxu0 0.0
    %v936 = vand.u32 %v568, 4294901760
    %937 = vmatpush1.msra.mxu0 %v936
    %938 = vmatprep.subr.mxu0 0.0
    %v939 = vand.u32 %v567, 4294901760
    %940 = vmatpush1.msra.mxu0 %v939
    %941 = vmatprep.subr.mxu0 0.0
    %v942 = vand.u32 %v566, 4294901760
    %943 = vmatpush1.msra.mxu0 %v942
    %944 = vmatprep.subr.mxu0 0.0
    %v945 = vand.u32 %v565, 4294901760
    %946 = vmatpush1.msra.mxu0 %v945
    %947 = vmatprep.subr.mxu0 0.0
    %v948 = vand.u32 %v564, 4294901760
    %949 = vmatpush1.msra.mxu0 %v948
    %950 = vmatprep.subr.mxu0 0.0
    %v951 = vand.u32 %v563, 4294901760
    %952 = vmatpush1.msra.mxu0 %v951
    %953 = vmatprep.subr.mxu0 0.0
    %v954 = vand.u32 %v562, 4294901760
    %955 = vmatpush1.msra.mxu0 %v954
    %956 = vmatprep.subr.mxu0 0.0
    %v957 = vand.u32 %v561, 4294901760
    %958 = vmatpush1.msra.mxu0 %v957
    %959 = vmatprep.subr.mxu0 0.0
    %v960 = vand.u32 %v560, 4294901760
    %961 = vmatpush1.msra.mxu0 %v960
    %962 = vmatprep.subr.mxu0 0.0
    %v963 = vand.u32 %v559, 4294901760
    %964 = vmatpush1.msra.mxu0 %v963
    %965 = vmatprep.subr.mxu0 0.0
    %v966 = vand.u32 %v558, 4294901760
    %967 = vmatpush1.msra.mxu0 %v966
    %968 = vmatprep.subr.mxu0 0.0
    %969 = vmatpush2.msra.mxu0 0.0
    %970 = vmatprep.subr.mxu0 0.0
    %971 = vmatpush2.msra.mxu0 0.0
    %972 = vmatprep.subr.mxu0 0.0
    %973 = vmatpush2.msra.mxu0 0.0
    %974 = vmatprep.subr.mxu0 0.0
    %975 = vmatpush2.msra.mxu0 0.0
    %976 = vmatprep.subr.mxu0 0.0
    %977 = vmatpush2.msra.mxu0 0.0
    %978 = vmatprep.subr.mxu0 0.0
    %979 = vmatpush2.msra.mxu0 0.0
    %980 = vmatprep.subr.mxu0 0.0
    %981 = vmatpush2.msra.mxu0 0.0
    %982 = vmatprep.subr.mxu0 0.0
    %983 = vmatpush2.msra.mxu0 0.0
    %984 = vmatprep.subr.mxu0 0.0
    %985 = vmatpush2.msra.mxu0 0.0
    %986 = vmatprep.subr.mxu0 0.0
    %987 = vmatpush2.msra.mxu0 0.0
    %988 = vmatprep.subr.mxu0 0.0
    %989 = vmatpush2.msra.mxu0 0.0
    %990 = vmatprep.subr.mxu0 0.0
    %991 = vmatpush2.msra.mxu0 0.0
    %992 = vmatprep.subr.mxu0 0.0
    %993 = vmatpush2.msra.mxu0 0.0
    %994 = vmatprep.subr.mxu0 0.0
    %995 = vmatpush2.msra.mxu0 0.0
    %996 = vmatprep.subr.mxu0 0.0
    %997 = vmatpush2.msra.mxu0 0.0
    %998 = vmatprep.subr.mxu0 0.0
    %999 = vmatpush2.msra.mxu0 0.0
    %1000 = vmatprep.mubr.f32.mxu0 0.0
    %v1001 = vand.u32 %v557, 4294901760
    %v1002 = vsub.f32 %v557, %v1001
    %v1003 = vand.u32 %v1002, 4294901760
    %1004 = vmatmul.mubr.f32.gmra.mxu0 %v1003
    %v1005 = vpop.f32.mrf.mxu0
    %v1006 = vadd.f32 %v917, %v1005
    %v1007 = vpop.f32.mrf.mxu0
    %1008 = vdwg.mxu0
    %1009 = vmatprep.subr.mxu0 0.0
    %v1010 = vand.u32 %v573, 4294901760
    %v1011 = vsub.f32 %v573, %v1010
    %v1012 = vand.u32 %v1011, 4294901760
    %1013 = vmatpush1.msra.mxu0 %v1012
    %1014 = vmatprep.subr.mxu0 0.0
    %v1015 = vand.u32 %v572, 4294901760
    %v1016 = vsub.f32 %v572, %v1015
    %v1017 = vand.u32 %v1016, 4294901760
    %1018 = vmatpush1.msra.mxu0 %v1017
    %1019 = vmatprep.subr.mxu0 0.0
    %v1020 = vand.u32 %v571, 4294901760
    %v1021 = vsub.f32 %v571, %v1020
    %v1022 = vand.u32 %v1021, 4294901760
    %1023 = vmatpush1.msra.mxu0 %v1022
    %1024 = vmatprep.subr.mxu0 0.0
    %v1025 = vand.u32 %v570, 4294901760
    %v1026 = vsub.f32 %v570, %v1025
    %v1027 = vand.u32 %v1026, 4294901760
    %1028 = vmatpush1.msra.mxu0 %v1027
    %1029 = vmatprep.subr.mxu0 0.0
    %v1030 = vand.u32 %v569, 4294901760
    %v1031 = vsub.f32 %v569, %v1030
    %v1032 = vand.u32 %v1031, 4294901760
    %1033 = vmatpush1.msra.mxu0 %v1032
    %1034 = vmatprep.subr.mxu0 0.0
    %v1035 = vand.u32 %v568, 4294901760
    %v1036 = vsub.f32 %v568, %v1035
    %v1037 = vand.u32 %v1036, 4294901760
    %1038 = vmatpush1.msra.mxu0 %v1037
    %1039 = vmatprep.subr.mxu0 0.0
    %v1040 = vand.u32 %v567, 4294901760
    %v1041 = vsub.f32 %v567, %v1040
    %v1042 = vand.u32 %v1041, 4294901760
    %1043 = vmatpush1.msra.mxu0 %v1042
    %1044 = vmatprep.subr.mxu0 0.0
    %v1045 = vand.u32 %v566, 4294901760
    %v1046 = vsub.f32 %v566, %v1045
    %v1047 = vand.u32 %v1046, 4294901760
    %1048 = vmatpush1.msra.mxu0 %v1047
    %1049 = vmatprep.subr.mxu0 0.0
    %v1050 = vand.u32 %v565, 4294901760
    %v1051 = vsub.f32 %v565, %v1050
    %v1052 = vand.u32 %v1051, 4294901760
    %1053 = vmatpush1.msra.mxu0 %v1052
    %1054 = vmatprep.subr.mxu0 0.0
    %v1055 = vand.u32 %v564, 4294901760
    %v1056 = vsub.f32 %v564, %v1055
    %v1057 = vand.u32 %v1056, 4294901760
    %1058 = vmatpush1.msra.mxu0 %v1057
    %1059 = vmatprep.subr.mxu0 0.0
    %v1060 = vand.u32 %v563, 4294901760
    %v1061 = vsub.f32 %v563, %v1060
    %v1062 = vand.u32 %v1061, 4294901760
    %1063 = vmatpush1.msra.mxu0 %v1062
    %1064 = vmatprep.subr.mxu0 0.0
    %v1065 = vand.u32 %v562, 4294901760
    %v1066 = vsub.f32 %v562, %v1065
    %v1067 = vand.u32 %v1066, 4294901760
    %1068 = vmatpush1.msra.mxu0 %v1067
    %1069 = vmatprep.subr.mxu0 0.0
    %v1070 = vand.u32 %v561, 4294901760
    %v1071 = vsub.f32 %v561, %v1070
    %v1072 = vand.u32 %v1071, 4294901760
    %1073 = vmatpush1.msra.mxu0 %v1072
    %1074 = vmatprep.subr.mxu0 0.0
    %v1075 = vand.u32 %v560, 4294901760
    %v1076 = vsub.f32 %v560, %v1075
    %v1077 = vand.u32 %v1076, 4294901760
    %1078 = vmatpush1.msra.mxu0 %v1077
    %1079 = vmatprep.subr.mxu0 0.0
    %v1080 = vand.u32 %v559, 4294901760
    %v1081 = vsub.f32 %v559, %v1080
    %v1082 = vand.u32 %v1081, 4294901760
    %1083 = vmatpush1.msra.mxu0 %v1082
    %1084 = vmatprep.subr.mxu0 0.0
    %v1085 = vand.u32 %v558, 4294901760
    %v1086 = vsub.f32 %v558, %v1085
    %v1087 = vand.u32 %v1086, 4294901760
    %1088 = vmatpush1.msra.mxu0 %v1087
    %1089 = vmatprep.subr.mxu0 0.0
    %1090 = vmatpush2.msra.mxu0 0.0
    %1091 = vmatprep.subr.mxu0 0.0
    %1092 = vmatpush2.msra.mxu0 0.0
    %1093 = vmatprep.subr.mxu0 0.0
    %1094 = vmatpush2.msra.mxu0 0.0
    %1095 = vmatprep.subr.mxu0 0.0
    %1096 = vmatpush2.msra.mxu0 0.0
    %1097 = vmatprep.subr.mxu0 0.0
    %1098 = vmatpush2.msra.mxu0 0.0
    %1099 = vmatprep.subr.mxu0 0.0
    %1100 = vmatpush2.msra.mxu0 0.0
    %1101 = vmatprep.subr.mxu0 0.0
    %1102 = vmatpush2.msra.mxu0 0.0
    %1103 = vmatprep.subr.mxu0 0.0
    %1104 = vmatpush2.msra.mxu0 0.0
    %1105 = vmatprep.subr.mxu0 0.0
    %1106 = vmatpush2.msra.mxu0 0.0
    %1107 = vmatprep.subr.mxu0 0.0
    %1108 = vmatpush2.msra.mxu0 0.0
    %1109 = vmatprep.subr.mxu0 0.0
    %1110 = vmatpush2.msra.mxu0 0.0
    %1111 = vmatprep.subr.mxu0 0.0
    %1112 = vmatpush2.msra.mxu0 0.0
    %1113 = vmatprep.subr.mxu0 0.0
    %1114 = vmatpush2.msra.mxu0 0.0
    %1115 = vmatprep.subr.mxu0 0.0
    %1116 = vmatpush2.msra.mxu0 0.0
    %1117 = vmatprep.subr.mxu0 0.0
    %1118 = vmatpush2.msra.mxu0 0.0
    %1119 = vmatprep.subr.mxu0 0.0
    %1120 = vmatpush2.msra.mxu0 0.0
    %1121 = vmatprep.mubr.f32.mxu0 0.0
    %v1122 = vand.u32 %v557, 4294901760
    %1123 = vmatmul.mubr.f32.gmra.mxu0 %v1122
    %v1124 = vpop.f32.mrf.mxu0
    %v1125 = vadd.f32 %v1006, %v1124
    %v1126 = vpop.f32.mrf.mxu0
    %1127 = vdwg.mxu0
    %1128 = vmatprep.subr.mxu0 0.0
    %v1129 = vand.u32 %v573, 4294901760
    %1130 = vmatpush1.msra.mxu0 %v1129
    %1131 = vmatprep.subr.mxu0 0.0
    %v1132 = vand.u32 %v572, 4294901760
    %1133 = vmatpush1.msra.mxu0 %v1132
    %1134 = vmatprep.subr.mxu0 0.0
    %v1135 = vand.u32 %v571, 4294901760
    %1136 = vmatpush1.msra.mxu0 %v1135
    %1137 = vmatprep.subr.mxu0 0.0
    %v1138 = vand.u32 %v570, 4294901760
    %1139 = vmatpush1.msra.mxu0 %v1138
    %1140 = vmatprep.subr.mxu0 0.0
    %v1141 = vand.u32 %v569, 4294901760
    %1142 = vmatpush1.msra.mxu0 %v1141
    %1143 = vmatprep.subr.mxu0 0.0
    %v1144 = vand.u32 %v568, 4294901760
    %1145 = vmatpush1.msra.mxu0 %v1144
    %1146 = vmatprep.subr.mxu0 0.0
    %v1147 = vand.u32 %v567, 4294901760
    %1148 = vmatpush1.msra.mxu0 %v1147
    %1149 = vmatprep.subr.mxu0 0.0
    %v1150 = vand.u32 %v566, 4294901760
    %1151 = vmatpush1.msra.mxu0 %v1150
    %1152 = vmatprep.subr.mxu0 0.0
    %v1153 = vand.u32 %v565, 4294901760
    %1154 = vmatpush1.msra.mxu0 %v1153
    %1155 = vmatprep.subr.mxu0 0.0
    %v1156 = vand.u32 %v564, 4294901760
    %1157 = vmatpush1.msra.mxu0 %v1156
    %1158 = vmatprep.subr.mxu0 0.0
    %v1159 = vand.u32 %v563, 4294901760
    %1160 = vmatpush1.msra.mxu0 %v1159
    %1161 = vmatprep.subr.mxu0 0.0
    %v1162 = vand.u32 %v562, 4294901760
    %1163 = vmatpush1.msra.mxu0 %v1162
    %1164 = vmatprep.subr.mxu0 0.0
    %v1165 = vand.u32 %v561, 4294901760
    %1166 = vmatpush1.msra.mxu0 %v1165
    %1167 = vmatprep.subr.mxu0 0.0
    %v1168 = vand.u32 %v560, 4294901760
    %1169 = vmatpush1.msra.mxu0 %v1168
    %1170 = vmatprep.subr.mxu0 0.0
    %v1171 = vand.u32 %v559, 4294901760
    %1172 = vmatpush1.msra.mxu0 %v1171
    %1173 = vmatprep.subr.mxu0 0.0
    %v1174 = vand.u32 %v558, 4294901760
    %1175 = vmatpush1.msra.mxu0 %v1174
    %1176 = vmatprep.subr.mxu0 0.0
    %1177 = vmatpush2.msra.mxu0 0.0
    %1178 = vmatprep.subr.mxu0 0.0
    %1179 = vmatpush2.msra.mxu0 0.0
    %1180 = vmatprep.subr.mxu0 0.0
    %1181 = vmatpush2.msra.mxu0 0.0
    %1182 = vmatprep.subr.mxu0 0.0
    %1183 = vmatpush2.msra.mxu0 0.0
    %1184 = vmatprep.subr.mxu0 0.0
    %1185 = vmatpush2.msra.mxu0 0.0
    %1186 = vmatprep.subr.mxu0 0.0
    %1187 = vmatpush2.msra.mxu0 0.0
    %1188 = vmatprep.subr.mxu0 0.0
    %1189 = vmatpush2.msra.mxu0 0.0
    %1190 = vmatprep.subr.mxu0 0.0
    %1191 = vmatpush2.msra.mxu0 0.0
    %1192 = vmatprep.subr.mxu0 0.0
    %1193 = vmatpush2.msra.mxu0 0.0
    %1194 = vmatprep.subr.mxu0 0.0
    %1195 = vmatpush2.msra.mxu0 0.0
    %1196 = vmatprep.subr.mxu0 0.0
    %1197 = vmatpush2.msra.mxu0 0.0
    %1198 = vmatprep.subr.mxu0 0.0
    %1199 = vmatpush2.msra.mxu0 0.0
    %1200 = vmatprep.subr.mxu0 0.0
    %1201 = vmatpush2.msra.mxu0 0.0
    %1202 = vmatprep.subr.mxu0 0.0
    %1203 = vmatpush2.msra.mxu0 0.0
    %1204 = vmatprep.subr.mxu0 0.0
    %1205 = vmatpush2.msra.mxu0 0.0
    %1206 = vmatprep.subr.mxu0 0.0
    %1207 = vmatpush2.msra.mxu0 0.0
    %1208 = vmatprep.mubr.f32.mxu0 0.0
    %v1209 = vand.u32 %v557, 4294901760
    %1210 = vmatmul.mubr.f32.gmra.mxu0 %v1209
    %v1211 = vpop.f32.mrf.mxu0
    %v1212 = vadd.f32 %v1125, %v1211
    %v1213 = vpop.f32.mrf.mxu0
    %1214 = vdwg.mxu0
    %v1215 = vld [vmem:[#allocation9 + $0x7] sm:$0x1]
    %v1216 = vlaneseq
    %v1217 = vshrl.u32 %v1216, 7
    %v1218 = vsub.s32 0, %v1217
    %v1219 = vrot.slane %v1215, %v1218
    %v1220 = vadd.f32 %v1212, %v1219
    %s1221 = sld [smem:[#allocation11 + $0x10]]
    %v1222 = vstv %s1221
    %v1223 = vadd.f32 %v1212, %v1222
    %v1224 = vld [vmem:[#allocation6] sm:$0xf]
    %v1225 = vld [vmem:[#allocation9 + $0x8] sm:$0x1]
    %v1226 = vlaneseq
    %v1227 = vshrl.u32 %v1226, 7
    %v1228 = vsub.s32 0, %v1227
    %v1229 = vrot.slane %v1225, %v1228
    %v1230 = vmul.f32 %v1224, %v1229
    %vm1231 = vcmask 125952
    %v1232 = vsel %vm1231, %v1230, 0.0
    %1233 = vadd.xlane.f32.xlu0 %v1232
    %v1234 = vpop.xlane.xlu0 %1233
    %s1235 = sld [smem:[#allocation11]]
    %v1236 = vstv %s1235
    %v1237 = vadd.f32 %v1234, %v1236
    %v1238 = vld [vmem:[#allocation8] sm:$0xf]
    %v1239 = vld [vmem:[#allocation9 + $0x9] sm:$0x1]
    %v1240 = vlaneseq
    %v1241 = vshrl.u32 %v1240, 7
    %v1242 = vsub.s32 0, %v1241
    %v1243 = vrot.slane %v1239, %v1242
    %v1244 = vmul.f32 %v1238, %v1243
    %v1245 = vsel %vm1231, %v1244, 0.0
    %1246 = vadd.xlane.f32.xlu0 %v1245
    %v1247 = vpop.xlane.xlu0 %1246
    %s1248 = sld [smem:[#allocation11 + $0x1]]
    %v1249 = vstv %s1248
    %v1250 = vadd.f32 %v1247, %v1249
    %s1251 = sld [smem:[#allocation11 + $0x2]]
    %v1252 = vstv %s1251
    %v1253 = vmul.f32 %v1223, %v1252
    %s1254 = sld [smem:[#allocation11 + $0x3]]
    %v1255 = vstv %s1254
    %v1256 = vmul.f32 %v1237, %v1255
    %v1257 = vadd.f32 %v1253, %v1256
    %s1258 = sld [smem:[#allocation11 + $0x4]]
    %v1259 = vstv %s1258
    %v1260 = vmul.f32 %v1250, %v1259
    %v1261 = vadd.f32 %v1257, %v1260
    %s1262 = sld [smem:[#allocation11 + $0xb]]
    %v1263 = vstv %s1262
    %v1264 = vadd.f32 %v1261, %v1263
    %s1265 = sld [smem:[#allocation11 + $0x5]]
    %v1266 = vstv %s1265
    %v1267 = vmul.f32 %v1223, %v1266
    %s1268 = sld [smem:[#allocation11 + $0x6]]
    %v1269 = vstv %s1268
    %v1270 = vmul.f32 %v1237, %v1269
    %v1271 = vadd.f32 %v1267, %v1270
    %s1272 = sld [smem:[#allocation11 + $0x7]]
    %v1273 = vstv %s1272
    %v1274 = vmul.f32 %v1250, %v1273
    %v1275 = vadd.f32 %v1271, %v1274
    %s1276 = sld [smem:[#allocation11 + $0xc]]
    %v1277 = vstv %s1276
    %v1278 = vadd.f32 %v1275, %v1277
    %s1279 = sld [smem:[#allocation11 + $0x8]]
    %v1280 = vstv %s1279
    %v1281 = vmul.f32 %v1223, %v1280
    %s1282 = sld [smem:[#allocation11 + $0x9]]
    %v1283 = vstv %s1282
    %v1284 = vmul.f32 %v1237, %v1283
    %v1285 = vadd.f32 %v1281, %v1284
    %s1286 = sld [smem:[#allocation11 + $0xa]]
    %v1287 = vstv %s1286
    %v1288 = vmul.f32 %v1250, %v1287
    %v1289 = vadd.f32 %v1285, %v1288
    %s1290 = sld [smem:[#allocation11 + $0xd]]
    %v1291 = vstv %s1290
    %v1292 = vadd.f32 %v1289, %v1291
    %v1293 = vmax.f32 %v1264, %v1278
    %v1294 = vmax.f32 %v1293, %v1292
    %v1295 = vsub.f32 %v1264, %v1294
    %v1296 = vmul.f32 %v1295, 1.442695
    %v1297 = vpow.pop %v1296
    %v1298 = vsub.f32 %v1278, %v1294
    %v1299 = vmul.f32 %v1298, 1.442695
    %v1300 = vpow.pop %v1299
    %v1301 = vsub.f32 %v1292, %v1294
    %v1302 = vmul.f32 %v1301, 1.442695
    %v1303 = vpow.pop %v1302
    %v1304 = vadd.f32 %v1297, %v1300
    %v1305 = vadd.f32 %v1304, %v1303
    %v1306 = vrcp.pop %v1305
    %v1307 = vmul.f32 1.0, %v1306
    %v1308 = vmul.f32 %v1297, %v1307
    %v1309 = vmul.f32 %v1300, %v1307
    %v1310 = vmul.f32 %v1303, %v1307
    %v1311 = vmul.f32 %v1223, %v1308
    %v1312 = vmul.f32 %v1237, %v1309
    %v1313 = vadd.f32 %v1311, %v1312
    %v1314 = vmul.f32 %v1250, %v1310
    %v1315 = vadd.f32 %v1313, %v1314
    %s1316 = sld [smem:[#allocation11 + $0xe]]
    %v1317 = vstv %s1316
    %v1318 = vmul.f32 %v1315, %v1317
    %s1319 = sld [smem:[#allocation11 + $0xf]]
    %v1320 = vstv %s1319
    %v1321 = vadd.f32 %v1318, %v1320
    %1323 = vrot.lane.b32.xlu0 %v1321, 124
    %v1324 = vpop.permute.xlu0 %1323
    %vm1326 = vcmask 3072
    %1327 = vst.msk [vmem:[#allocation12] sm:$0xf] %vm1326, %v1324
    %1329 = vrot.lane.b32.xlu0 %v1220, 1
    %v1330 = vpop.permute.xlu0 %1329
    %vm1332 = vcmask 35848
    %1333 = vst.msk [vmem:[#allocation12] sm:$0xf] %vm1332, %v1330
    %1335 = vrot.lane.b32.xlu0 %v1308, 1
    %v1336 = vpop.permute.xlu0 %1335
    %vm1338 = vcmask 44072
    %1339 = vst.msk [vmem:[#allocation12] sm:$0xf] %vm1338, %v1336
    %1341 = vrot.lane.b32.xlu0 %v1309, 2
    %v1342 = vpop.permute.xlu0 %1341
    %vm1344 = vcmask 52272
    %1345 = vst.msk [vmem:[#allocation12] sm:$0xf] %vm1344, %v1342
    %1347 = vrot.lane.b32.xlu0 %v1310, 3
    %v1348 = vpop.permute.xlu0 %1347
    %vm1350 = vcmask 60472
    %1351 = vst.msk [vmem:[#allocation12] sm:$0xf] %vm1350, %v1348
    // Predicated region
    $region42: #{tpu_custom_call.1} parent=1 // pred_check
      _
    $region43: #{tpu_custom_call.1} parent=1 // pred_check_branch
      %1353 = sbr.rel (0) target = $region45
    $region44: #{tpu_custom_call.1} parent=1 // pred_region
      %s1355 = ssub.s32 64, 64
      %1356 = vsyncadd [#allocation4], %s1355
      %s1358 = sshll.u32 [#allocation12], 4
      %s1359 = int_to_ptr.vmem [resolvable:$true] %s1358
      %1361 = dma.vmem_to_hbm [thread:$0]  %s1359, 64, %s5, [#allocation4]
    $region45: #{tpu_custom_call.1} parent=1 // pred_fallthru
      _
    // Predicated region
    $region46: #{tpu_custom_call.1} parent=1 // pred_check
      _
    $region47: #{tpu_custom_call.1} parent=1 // pred_check_branch
      %1363 = sbr.rel (0) target = $region49
    $region48: #{tpu_custom_call.1} parent=1 // pred_region
      %1364 = dma.done [#allocation4], 64
    $region49: #{tpu_custom_call.1} parent=1 // pred_fallthru
      _
    %1365 = vsyncpa [#allocation3], 1
    %1366 = vsyncpa [#allocation7], 1
    %1367 = vsyncpa [#allocation10], 1
    %1368 = vsyncpa [#allocation4], 1
    %1369 = vsyncpa [#allocation5], 1

</llo_original>
